<compile_context>
chip_gen: v7x
topology: tpu7x:2x2x1
jax: 0.10.0
libtpu: 0.0.40
codegen_flags: <defaults>
</compile_context>

<pallas_src>
import functools
import math

import numpy as np
import jax
import jax.numpy as jnp
from jax.experimental import pallas as pl
from jax.experimental.pallas import tpu as pltpu

LN_EPS = 1e-5  # PyTorch nn.LayerNorm default


# ---------------------------------------------------------------------------
# Pallas kernel: 3x (Linear -> LayerNorm -> ReLU); PE is pre-folded into b1.
# ---------------------------------------------------------------------------
def _ttfe_kernel(x_ref,
                 w1_ref, b1_ref, g1_ref, be1_ref,
                 w2_ref, b2_ref, g2_ref, be2_ref,
                 w3_ref, b3_ref, g3_ref, be3_ref,
                 o_ref):
    def linear_ln_relu(h_bf16, w_r, b_r, g_r, be_r):
        # bf16 MXU operands, f32 accumulation; bias/LN/ReLU stay in f32.
        y = jnp.dot(h_bf16, w_r[...], preferred_element_type=jnp.float32) + b_r[...]
        mu = jnp.mean(y, axis=-1, keepdims=True)
        var = jnp.mean(jnp.square(y - mu), axis=-1, keepdims=True)
        # Fold the LayerNorm weight into the normalizer; rsqrt lands on the EUP slot.
        scale = g_r[...] * jax.lax.rsqrt(var + LN_EPS)
        return jnp.maximum((y - mu) * scale + be_r[...], 0.0)

    h = linear_ln_relu(x_ref[...], w1_ref, b1_ref, g1_ref, be1_ref)
    # TODO(synk): nn.Dropout between layers is identity in eval mode; not implemented.
    h = linear_ln_relu(h.astype(jnp.bfloat16), w2_ref, b2_ref, g2_ref, be2_ref)
    h = linear_ln_relu(h.astype(jnp.bfloat16), w3_ref, b3_ref, g3_ref, be3_ref)
    o_ref[...] = h.astype(o_ref.dtype)


# ---------------------------------------------------------------------------
# Helpers
# ---------------------------------------------------------------------------
def _round_up(n, m):
    return ((n + m - 1) // m) * m


def _default_row_tile(n_rows):
    # Aim for ~4 grid steps with minimal padding (even grid -> >=2 pipelined steps per
    # TensorCore on v7x), tiles capped at 512 rows and rounded to bf16 sublane packing.
    tile = min(512, _round_up(pl.cdiv(n_rows, 4), 16))
    if n_rows >= 1024:
        # Large inputs: keep the MXU M dimension long (v6e/v7x 256-wide MXU).
        tile = max(tile, 256)
    tile = max(tile, 16)
    steps = pl.cdiv(n_rows, tile)
    if steps > 1 and steps % 2 == 1:
        # Avoid odd grids (load imbalance across v7x's two TensorCores).
        tile = max(16, _round_up(pl.cdiv(n_rows, steps + 1), 16))
    return tile


def _vmem_limit_bytes(row_tile, d0, h1, h2, e, weight_bufs):
    act_in = 2 * row_tile * d0 * 2                        # double-buffered bf16 x tiles
    act_out = 2 * row_tile * e * 4                        # double-buffered f32 out tiles
    wgt = weight_bufs * 2 * (d0 * h1 + h1 * h2 + h2 * e)  # bf16 weights
    vec = weight_bufs * 4 * 3 * (h1 + h2 + e)             # f32 bias/gamma/beta vectors
    tmp = 3 * row_tile * max(d0, h1, h2, e) * 4           # f32 LN intermediates headroom
    need = act_in + act_out + wgt + vec + tmp
    # Request only what the working set needs (plus headroom); cap well below v7x's
    # 64 MiB physical VMEM so Mosaic scratch / neighboring fusions keep room.
    return int(min(48 * 2**20, 2 * need + (8 << 20)))


def build_positional_encoding(seq_len: int, d_model: int) -> jnp.ndarray:
    pe = np.zeros((seq_len, d_model), dtype=np.float32)
    position = np.arange(seq_len, dtype=np.float32)[:, None]
    div_term = np.exp(np.arange(0, d_model, 2, dtype=np.float32)
                      * (-math.log(10000.0) / d_model))
    pe[:, 0::2] = np.sin(position * div_term[: (d_model + 1) // 2])
    pe[:, 1::2] = np.cos(position * div_term[: d_model // 2])
    return jnp.asarray(pe)


@functools.lru_cache(maxsize=None)
def _buffered_one_supported():
    """One-time cached probe: does this jax/libtpu accept pipeline_mode=pl.Buffered(1)?"""
    def probe_kernel(x_ref, c_ref, o_ref):
        o_ref[...] = x_ref[...] + c_ref[...]

    try:
        f = pl.pallas_call(
            probe_kernel,
            out_shape=jax.ShapeDtypeStruct((16, 128), jnp.float32),
            grid_spec=pltpu.PrefetchScalarGridSpec(
                num_scalar_prefetch=0,
                grid=(2,),
                in_specs=[
                    pl.BlockSpec((8, 128), lambda i: (i, 0)),
                    pl.BlockSpec((8, 128), lambda i: (0, 0),
                                 pipeline_mode=pl.Buffered(1)),
                ],
                out_specs=pl.BlockSpec((8, 128), lambda i: (i, 0)),
            ),
        )
        jax.jit(f).lower(jax.ShapeDtypeStruct((16, 128), jnp.float32),
                         jax.ShapeDtypeStruct((8, 128), jnp.float32)).compile()
        return True
    except Exception:
        return False


# ---------------------------------------------------------------------------
# Jitted forward: fold PE, cast/pad, pallas_call, reshape back.
# ---------------------------------------------------------------------------
def _forward_impl(x, pe,
                  w1, b1, g1, be1,
                  w2, b2, g2, be2,
                  w3, b3, g3, be3,
                  *, row_tile, single_buffer):
    batch, num_meters, T, F = x.shape
    n_rows = batch * num_meters
    d0 = T * F
    h1, h2, e = w1.shape[1], w2.shape[1], w3.shape[1]
    n_pad = _round_up(n_rows, row_tile)
    grid = (n_pad // row_tile,)

    # Fold the positional encoding into the first bias (exact by linearity); the PE
    # contribution stays in f32 instead of going through the bf16 activation cast.
    pe_flat = pe.reshape(1, d0).astype(jnp.float32)
    b1_eff = pe_flat @ w1.astype(jnp.float32) + b1.astype(jnp.float32)

    # bf16 activation stream: halves the only per-step HBM input traffic.
    x_flat = x.reshape(n_rows, d0).astype(jnp.bfloat16)
    if n_pad != n_rows:
        x_flat = jnp.pad(x_flat, ((0, n_pad - n_rows), (0, 0)))

    w1b, w2b, w3b = (w.astype(jnp.bfloat16) for w in (w1, w2, w3))
    g1, be1 = g1.astype(jnp.float32), be1.astype(jnp.float32)
    b2, g2, be2 = (v.astype(jnp.float32) for v in (b2, g2, be2))
    b3, g3, be3 = (v.astype(jnp.float32) for v in (b3, g3, be3))

    def const_spec(shape):
        zeros = (0,) * len(shape)
        if single_buffer:
            # Loop-invariant operand: fetched once, one VMEM buffer is enough.
            return pl.BlockSpec(shape, lambda i: zeros, pipeline_mode=pl.Buffered(1))
        return pl.BlockSpec(shape, lambda i: zeros)

    in_specs = [
        pl.BlockSpec((row_tile, d0), lambda i: (i, 0)),   # activation rows (bf16)
        const_spec((d0, h1)), const_spec((1, h1)), const_spec((1, h1)), const_spec((1, h1)),
        const_spec((h1, h2)), const_spec((1, h2)), const_spec((1, h2)), const_spec((1, h2)),
        const_spec((h2, e)),  const_spec((1, e)),  const_spec((1, e)),  const_spec((1, e)),
    ]
    out_spec = pl.BlockSpec((row_tile, e), lambda i: (i, 0))

    weight_bufs = 1 if single_buffer else 2
    cost = pl.CostEstimate(
        flops=2 * n_pad * (d0 * h1 + h1 * h2 + h2 * e),
        transcendentals=3 * n_pad,  # one rsqrt per row per LayerNorm
        bytes_accessed=(2 * n_pad * d0 + 4 * n_pad * e
                        + 2 * (d0 * h1 + h1 * h2 + h2 * e)
                        + 4 * 3 * (h1 + h2 + e)),
    )

    out = pl.pallas_call(
        _ttfe_kernel,
        out_shape=jax.ShapeDtypeStruct((n_pad, e), jnp.float32),
        grid_spec=pltpu.PrefetchScalarGridSpec(
            num_scalar_prefetch=0,
            grid=grid,
            in_specs=in_specs,
            out_specs=out_spec,
        ),
        compiler_params=pltpu.CompilerParams(
            dimension_semantics=("parallel",),
            vmem_limit_bytes=_vmem_limit_bytes(row_tile, d0, h1, h2, e, weight_bufs),
        ),
        cost_estimate=cost,
    )(x_flat,
      w1b, b1_eff, g1, be1,
      w2b, b2, g2, be2,
      w3b, b3, g3, be3)

    return out[:n_rows].reshape(batch, num_meters, e)


_forward = jax.jit(_forward_impl, static_argnames=("row_tile", "single_buffer"))


def traffic_temporal_feature_extractor(x, params, *, row_tile=None):
    """x: [batch, num_meters, seq_len, num_features] -> [batch, num_meters, embedding_dim]."""
    n_rows = x.shape[0] * x.shape[1]
    if row_tile is None:
        row_tile = _default_row_tile(n_rows)
    row_tile = max(16, _round_up(int(row_tile), 16))
    return _forward(
        x, params["pe"],
        params["w1"], params["b1"], params["g1"], params["be1"],
        params["w2"], params["b2"], params["g2"], params["be2"],
        params["w3"], params["b3"], params["g3"], params["be3"],
        row_tile=row_tile, single_buffer=_buffered_one_supported())


# ---------------------------------------------------------------------------
# Deterministic parameter init + pure-JAX (all-f32) reference
# ---------------------------------------------------------------------------
def init_params(key, seq_len, num_features, hidden_dims, embedding_dim):
    dims = [seq_len * num_features] + list(hidden_dims) + [embedding_dim]
    params = {"pe": build_positional_encoding(seq_len, num_features)}
    for i, n in enumerate(("1", "2", "3")):
        key, kw, kb = jax.random.split(key, 3)
        fan_in, fan_out = dims[i], dims[i + 1]
        bound = 1.0 / math.sqrt(fan_in)
        params[f"w{n}"] = jax.random.uniform(kw, (fan_in, fan_out),
                                             jnp.float32, -bound, bound)
        params[f"b{n}"] = jax.random.uniform(kb, (1, fan_out),
                                             jnp.float32, -bound, bound)
        params[f"g{n}"] = jnp.ones((1, fan_out), jnp.float32)    # LayerNorm weight
        params[f"be{n}"] = jnp.zeros((1, fan_out), jnp.float32)  # LayerNorm bias
    return params


def reference_forward(x, params):
    batch, num_meters, T, F = x.shape
    h = (x + params["pe"]).reshape(batch * num_meters, T * F)
    for n in ("1", "2", "3"):
        h = h @ params[f"w{n}"] + params[f"b{n}"]
        mu = jnp.mean(h, axis=-1, keepdims=True)
        var = jnp.mean(jnp.square(h - mu), axis=-1, keepdims=True)
        h = (h - mu) * jax.lax.rsqrt(var + LN_EPS)
        h = h * params[f"g{n}"] + params[f"be{n}"]
        h = jnp.maximum(h, 0.0)
    return h.reshape(batch, num_meters, -1)


if __name__ == "__main__":
    # 300 rows exercises the tile heuristic (row_tile=80, even grid of 4, 20 padded rows).
    batch, num_meters, seq_len, num_features = 3, 100, 12, 4
    hidden_dims, embedding_dim = (128, 128), 64

    key = jax.random.PRNGKey(0)
    key, kx = jax.random.split(key)
    x = jax.random.normal(kx, (batch, num_meters, seq_len, num_features), jnp.float32)

    params = init_params(key, seq_len, num_features, hidden_dims, embedding_dim)

    out = traffic_temporal_feature_extractor(x, params)
    out = jax.block_until_ready(out)

    ref = jax.block_until_ready(reference_forward(x, params))
    assert out.shape == (batch, num_meters, embedding_dim), out.shape

    # bf16 MXU operands / bf16 activation stream vs. the all-f32 reference:
    # expect ~1e-2-scale deviations (inference-acceptable; documented for consumers).
    max_err = float(jnp.max(jnp.abs(out - ref)))
    mean_err = float(jnp.mean(jnp.abs(out - ref)))
    assert max_err < 1.5e-1 and mean_err < 1.5e-2, ("mismatch vs reference",
                                                    max_err, mean_err)

    print("KERNEL_OK")
</pallas_src>

<mosaic_0001>
module attributes {stable_mosaic.version = 11 : i64} {
  func.func @_ttfe_kernel(%arg0: i32, %arg1: memref<80x48xbf16, #tpu.memory_space<vmem>>, %arg2: memref<48x128xbf16, #tpu.memory_space<vmem>>, %arg3: memref<1x128xf32, #tpu.memory_space<vmem>>, %arg4: memref<1x128xf32, #tpu.memory_space<vmem>>, %arg5: memref<1x128xf32, #tpu.memory_space<vmem>>, %arg6: memref<128x128xbf16, #tpu.memory_space<vmem>>, %arg7: memref<1x128xf32, #tpu.memory_space<vmem>>, %arg8: memref<1x128xf32, #tpu.memory_space<vmem>>, %arg9: memref<1x128xf32, #tpu.memory_space<vmem>>, %arg10: memref<128x64xbf16, #tpu.memory_space<vmem>>, %arg11: memref<1x64xf32, #tpu.memory_space<vmem>>, %arg12: memref<1x64xf32, #tpu.memory_space<vmem>>, %arg13: memref<1x64xf32, #tpu.memory_space<vmem>>, %arg14: memref<80x64xf32, #tpu.memory_space<vmem>>) attributes {dimension_semantics = [#tpu.dimension_semantics<parallel>], iteration_bounds = array<i64: 4>, scalar_prefetch = 0 : i64, scratch_operands = 0 : i64, tpu.core_type = #tpu.core_type<tc>, window_params = [{transform_indices = @transform_0, window_bounds = array<i64: 80, 48>}, {pipeline_mode = #tpu.pipeline_mode<synchronous>, transform_indices = @transform_1, window_bounds = array<i64: 48, 128>}, {pipeline_mode = #tpu.pipeline_mode<synchronous>, transform_indices = @transform_2, window_bounds = array<i64: 1, 128>}, {pipeline_mode = #tpu.pipeline_mode<synchronous>, transform_indices = @transform_3, window_bounds = array<i64: 1, 128>}, {pipeline_mode = #tpu.pipeline_mode<synchronous>, transform_indices = @transform_4, window_bounds = array<i64: 1, 128>}, {pipeline_mode = #tpu.pipeline_mode<synchronous>, transform_indices = @transform_5, window_bounds = array<i64: 128, 128>}, {pipeline_mode = #tpu.pipeline_mode<synchronous>, transform_indices = @transform_6, window_bounds = array<i64: 1, 128>}, {pipeline_mode = #tpu.pipeline_mode<synchronous>, transform_indices = @transform_7, window_bounds = array<i64: 1, 128>}, {pipeline_mode = #tpu.pipeline_mode<synchronous>, transform_indices = @transform_8, window_bounds = array<i64: 1, 128>}, {pipeline_mode = #tpu.pipeline_mode<synchronous>, transform_indices = @transform_9, window_bounds = array<i64: 128, 64>}, {pipeline_mode = #tpu.pipeline_mode<synchronous>, transform_indices = @transform_10, window_bounds = array<i64: 1, 64>}, {pipeline_mode = #tpu.pipeline_mode<synchronous>, transform_indices = @transform_11, window_bounds = array<i64: 1, 64>}, {pipeline_mode = #tpu.pipeline_mode<synchronous>, transform_indices = @transform_12, window_bounds = array<i64: 1, 64>}, {transform_indices = @transform_13, window_bounds = array<i64: 80, 64>}]} {
    %c0 = arith.constant 0 : index
    %c0_0 = arith.constant 0 : index
    %0 = vector.load %arg1[%c0, %c0_0] : memref<80x48xbf16, #tpu.memory_space<vmem>>, vector<80x48xbf16>
    %c0_1 = arith.constant 0 : index
    %c0_2 = arith.constant 0 : index
    %1 = vector.load %arg2[%c0_1, %c0_2] : memref<48x128xbf16, #tpu.memory_space<vmem>>, vector<48x128xbf16>
    %cst = arith.constant dense<0.000000e+00> : vector<80x128xf32>
    %2 = tpu.matmul %0, %1, %cst {dimension_numbers = #tpu.dot_dimension_numbers<[1], [0], [0], [1], [0, 0, 1, 1], [], []>} : vector<80x48xbf16>, vector<48x128xbf16>, vector<80x128xf32> -> vector<80x128xf32>
    %c0_3 = arith.constant 0 : index
    %c0_4 = arith.constant 0 : index
    %3 = vector.load %arg3[%c0_3, %c0_4] : memref<1x128xf32, #tpu.memory_space<vmem>>, vector<1x128xf32>
    %4 = vector.broadcast %3 : vector<1x128xf32> to vector<80x128xf32>
    %5 = arith.addf %2, %4 : vector<80x128xf32>
    %cst_5 = arith.constant dense<0.000000e+00> : vector<80xf32>
    %6 = vector.multi_reduction <add>, %5, %cst_5 [1] : vector<80x128xf32> to vector<80xf32>
    %7 = vector.shape_cast %6 : vector<80xf32> to vector<80x1xf32>
    %cst_6 = arith.constant 1.280000e+02 : f32
    %8 = vector.broadcast %cst_6 : f32 to vector<80x1xf32>
    %9 = arith.divf %7, %8 : vector<80x1xf32>
    %10 = vector.broadcast %9 : vector<80x1xf32> to vector<80x128xf32>
    %11 = arith.subf %5, %10 : vector<80x128xf32>
    %12 = arith.mulf %11, %11 : vector<80x128xf32>
    %cst_7 = arith.constant dense<0.000000e+00> : vector<80xf32>
    %13 = vector.multi_reduction <add>, %12, %cst_7 [1] : vector<80x128xf32> to vector<80xf32>
    %14 = vector.shape_cast %13 : vector<80xf32> to vector<80x1xf32>
    %cst_8 = arith.constant 1.280000e+02 : f32
    %15 = vector.broadcast %cst_8 : f32 to vector<80x1xf32>
    %16 = arith.divf %14, %15 : vector<80x1xf32>
    %c0_9 = arith.constant 0 : index
    %c0_10 = arith.constant 0 : index
    %17 = vector.load %arg4[%c0_9, %c0_10] : memref<1x128xf32, #tpu.memory_space<vmem>>, vector<1x128xf32>
    %cst_11 = arith.constant 9.99999974E-6 : f32
    %18 = vector.broadcast %cst_11 : f32 to vector<80x1xf32>
    %19 = arith.addf %16, %18 : vector<80x1xf32>
    %20 = math.rsqrt %19 : vector<80x1xf32>
    %21 = vector.broadcast %17 : vector<1x128xf32> to vector<80x128xf32>
    %22 = vector.broadcast %20 : vector<80x1xf32> to vector<80x128xf32>
    %23 = arith.mulf %21, %22 : vector<80x128xf32>
    %24 = vector.broadcast %9 : vector<80x1xf32> to vector<80x128xf32>
    %25 = arith.subf %5, %24 : vector<80x128xf32>
    %26 = arith.mulf %25, %23 : vector<80x128xf32>
    %c0_12 = arith.constant 0 : index
    %c0_13 = arith.constant 0 : index
    %27 = vector.load %arg5[%c0_12, %c0_13] : memref<1x128xf32, #tpu.memory_space<vmem>>, vector<1x128xf32>
    %28 = vector.broadcast %27 : vector<1x128xf32> to vector<80x128xf32>
    %29 = arith.addf %26, %28 : vector<80x128xf32>
    %cst_14 = arith.constant 0.000000e+00 : f32
    %30 = vector.broadcast %cst_14 : f32 to vector<80x128xf32>
    %31 = arith.maximumf %29, %30 : vector<80x128xf32>
    %32 = arith.truncf %31 : vector<80x128xf32> to vector<80x128xbf16>
    %c0_15 = arith.constant 0 : index
    %c0_16 = arith.constant 0 : index
    %33 = vector.load %arg6[%c0_15, %c0_16] : memref<128x128xbf16, #tpu.memory_space<vmem>>, vector<128x128xbf16>
    %cst_17 = arith.constant dense<0.000000e+00> : vector<80x128xf32>
    %34 = tpu.matmul %32, %33, %cst_17 {dimension_numbers = #tpu.dot_dimension_numbers<[1], [0], [0], [1], [0, 0, 1, 1], [], []>} : vector<80x128xbf16>, vector<128x128xbf16>, vector<80x128xf32> -> vector<80x128xf32>
    %c0_18 = arith.constant 0 : index
    %c0_19 = arith.constant 0 : index
    %35 = vector.load %arg7[%c0_18, %c0_19] : memref<1x128xf32, #tpu.memory_space<vmem>>, vector<1x128xf32>
    %36 = vector.broadcast %35 : vector<1x128xf32> to vector<80x128xf32>
    %37 = arith.addf %34, %36 : vector<80x128xf32>
    %cst_20 = arith.constant dense<0.000000e+00> : vector<80xf32>
    %38 = vector.multi_reduction <add>, %37, %cst_20 [1] : vector<80x128xf32> to vector<80xf32>
    %39 = vector.shape_cast %38 : vector<80xf32> to vector<80x1xf32>
    %cst_21 = arith.constant 1.280000e+02 : f32
    %40 = vector.broadcast %cst_21 : f32 to vector<80x1xf32>
    %41 = arith.divf %39, %40 : vector<80x1xf32>
    %42 = vector.broadcast %41 : vector<80x1xf32> to vector<80x128xf32>
    %43 = arith.subf %37, %42 : vector<80x128xf32>
    %44 = arith.mulf %43, %43 : vector<80x128xf32>
    %cst_22 = arith.constant dense<0.000000e+00> : vector<80xf32>
    %45 = vector.multi_reduction <add>, %44, %cst_22 [1] : vector<80x128xf32> to vector<80xf32>
    %46 = vector.shape_cast %45 : vector<80xf32> to vector<80x1xf32>
    %cst_23 = arith.constant 1.280000e+02 : f32
    %47 = vector.broadcast %cst_23 : f32 to vector<80x1xf32>
    %48 = arith.divf %46, %47 : vector<80x1xf32>
    %c0_24 = arith.constant 0 : index
    %c0_25 = arith.constant 0 : index
    %49 = vector.load %arg8[%c0_24, %c0_25] : memref<1x128xf32, #tpu.memory_space<vmem>>, vector<1x128xf32>
    %cst_26 = arith.constant 9.99999974E-6 : f32
    %50 = vector.broadcast %cst_26 : f32 to vector<80x1xf32>
    %51 = arith.addf %48, %50 : vector<80x1xf32>
    %52 = math.rsqrt %51 : vector<80x1xf32>
    %53 = vector.broadcast %49 : vector<1x128xf32> to vector<80x128xf32>
    %54 = vector.broadcast %52 : vector<80x1xf32> to vector<80x128xf32>
    %55 = arith.mulf %53, %54 : vector<80x128xf32>
    %56 = vector.broadcast %41 : vector<80x1xf32> to vector<80x128xf32>
    %57 = arith.subf %37, %56 : vector<80x128xf32>
    %58 = arith.mulf %57, %55 : vector<80x128xf32>
    %c0_27 = arith.constant 0 : index
    %c0_28 = arith.constant 0 : index
    %59 = vector.load %arg9[%c0_27, %c0_28] : memref<1x128xf32, #tpu.memory_space<vmem>>, vector<1x128xf32>
    %60 = vector.broadcast %59 : vector<1x128xf32> to vector<80x128xf32>
    %61 = arith.addf %58, %60 : vector<80x128xf32>
    %cst_29 = arith.constant 0.000000e+00 : f32
    %62 = vector.broadcast %cst_29 : f32 to vector<80x128xf32>
    %63 = arith.maximumf %61, %62 : vector<80x128xf32>
    %64 = arith.truncf %63 : vector<80x128xf32> to vector<80x128xbf16>
    %c0_30 = arith.constant 0 : index
    %c0_31 = arith.constant 0 : index
    %65 = vector.load %arg10[%c0_30, %c0_31] : memref<128x64xbf16, #tpu.memory_space<vmem>>, vector<128x64xbf16>
    %cst_32 = arith.constant dense<0.000000e+00> : vector<80x64xf32>
    %66 = tpu.matmul %64, %65, %cst_32 {dimension_numbers = #tpu.dot_dimension_numbers<[1], [0], [0], [1], [0, 0, 1, 1], [], []>} : vector<80x128xbf16>, vector<128x64xbf16>, vector<80x64xf32> -> vector<80x64xf32>
    %c0_33 = arith.constant 0 : index
    %c0_34 = arith.constant 0 : index
    %67 = vector.load %arg11[%c0_33, %c0_34] : memref<1x64xf32, #tpu.memory_space<vmem>>, vector<1x64xf32>
    %68 = vector.broadcast %67 : vector<1x64xf32> to vector<80x64xf32>
    %69 = arith.addf %66, %68 : vector<80x64xf32>
    %cst_35 = arith.constant dense<0.000000e+00> : vector<80xf32>
    %70 = vector.multi_reduction <add>, %69, %cst_35 [1] : vector<80x64xf32> to vector<80xf32>
    %71 = vector.shape_cast %70 : vector<80xf32> to vector<80x1xf32>
    %cst_36 = arith.constant 6.400000e+01 : f32
    %72 = vector.broadcast %cst_36 : f32 to vector<80x1xf32>
    %73 = arith.divf %71, %72 : vector<80x1xf32>
    %74 = vector.broadcast %73 : vector<80x1xf32> to vector<80x64xf32>
    %75 = arith.subf %69, %74 : vector<80x64xf32>
    %76 = arith.mulf %75, %75 : vector<80x64xf32>
    %cst_37 = arith.constant dense<0.000000e+00> : vector<80xf32>
    %77 = vector.multi_reduction <add>, %76, %cst_37 [1] : vector<80x64xf32> to vector<80xf32>
    %78 = vector.shape_cast %77 : vector<80xf32> to vector<80x1xf32>
    %cst_38 = arith.constant 6.400000e+01 : f32
    %79 = vector.broadcast %cst_38 : f32 to vector<80x1xf32>
    %80 = arith.divf %78, %79 : vector<80x1xf32>
    %c0_39 = arith.constant 0 : index
    %c0_40 = arith.constant 0 : index
    %81 = vector.load %arg12[%c0_39, %c0_40] : memref<1x64xf32, #tpu.memory_space<vmem>>, vector<1x64xf32>
    %cst_41 = arith.constant 9.99999974E-6 : f32
    %82 = vector.broadcast %cst_41 : f32 to vector<80x1xf32>
    %83 = arith.addf %80, %82 : vector<80x1xf32>
    %84 = math.rsqrt %83 : vector<80x1xf32>
    %85 = vector.broadcast %81 : vector<1x64xf32> to vector<80x64xf32>
    %86 = vector.broadcast %84 : vector<80x1xf32> to vector<80x64xf32>
    %87 = arith.mulf %85, %86 : vector<80x64xf32>
    %88 = vector.broadcast %73 : vector<80x1xf32> to vector<80x64xf32>
    %89 = arith.subf %69, %88 : vector<80x64xf32>
    %90 = arith.mulf %89, %87 : vector<80x64xf32>
    %c0_42 = arith.constant 0 : index
    %c0_43 = arith.constant 0 : index
    %91 = vector.load %arg13[%c0_42, %c0_43] : memref<1x64xf32, #tpu.memory_space<vmem>>, vector<1x64xf32>
    %92 = vector.broadcast %91 : vector<1x64xf32> to vector<80x64xf32>
    %93 = arith.addf %90, %92 : vector<80x64xf32>
    %cst_44 = arith.constant 0.000000e+00 : f32
    %94 = vector.broadcast %cst_44 : f32 to vector<80x64xf32>
    %95 = arith.maximumf %93, %94 : vector<80x64xf32>
    %c0_45 = arith.constant 0 : index
    %c0_46 = arith.constant 0 : index
    %96 = vector.load %arg14[%c0_45, %c0_46] : memref<80x64xf32, #tpu.memory_space<vmem>>, vector<80x64xf32>
    tpu.vector_store %arg14[%c0_45, %c0_46], %95 {strides = array<i32>} : memref<80x64xf32, #tpu.memory_space<vmem>>, vector<80x64xf32>,
    return
  }
  func.func @transform_0(%arg0: i32) -> (i32, i32) {
    %c0_i32 = arith.constant 0 : i32
    %c0_i32_0 = arith.constant 0 : i32
    return %arg0, %c0_i32 : i32, i32
  }
  func.func @transform_1(%arg0: i32) -> (i32, i32) {
    %c0_i32 = arith.constant 0 : i32
    %c0_i32_0 = arith.constant 0 : i32
    %c0_i32_1 = arith.constant 0 : i32
    return %c0_i32, %c0_i32_0 : i32, i32
  }
  func.func @transform_2(%arg0: i32) -> (i32, i32) {
    %c0_i32 = arith.constant 0 : i32
    %c0_i32_0 = arith.constant 0 : i32
    %c0_i32_1 = arith.constant 0 : i32
    return %c0_i32, %c0_i32_0 : i32, i32
  }
  func.func @transform_3(%arg0: i32) -> (i32, i32) {
    %c0_i32 = arith.constant 0 : i32
    %c0_i32_0 = arith.constant 0 : i32
    %c0_i32_1 = arith.constant 0 : i32
    return %c0_i32, %c0_i32_0 : i32, i32
  }
  func.func @transform_4(%arg0: i32) -> (i32, i32) {
    %c0_i32 = arith.constant 0 : i32
    %c0_i32_0 = arith.constant 0 : i32
    %c0_i32_1 = arith.constant 0 : i32
    return %c0_i32, %c0_i32_0 : i32, i32
  }
  func.func @transform_5(%arg0: i32) -> (i32, i32) {
    %c0_i32 = arith.constant 0 : i32
    %c0_i32_0 = arith.constant 0 : i32
    %c0_i32_1 = arith.constant 0 : i32
    return %c0_i32, %c0_i32_0 : i32, i32
  }
  func.func @transform_6(%arg0: i32) -> (i32, i32) {
    %c0_i32 = arith.constant 0 : i32
    %c0_i32_0 = arith.constant 0 : i32
    %c0_i32_1 = arith.constant 0 : i32
    return %c0_i32, %c0_i32_0 : i32, i32
  }
  func.func @transform_7(%arg0: i32) -> (i32, i32) {
    %c0_i32 = arith.constant 0 : i32
    %c0_i32_0 = arith.constant 0 : i32
    %c0_i32_1 = arith.constant 0 : i32
    return %c0_i32, %c0_i32_0 : i32, i32
  }
  func.func @transform_8(%arg0: i32) -> (i32, i32) {
    %c0_i32 = arith.constant 0 : i32
    %c0_i32_0 = arith.constant 0 : i32
    %c0_i32_1 = arith.constant 0 : i32
    return %c0_i32, %c0_i32_0 : i32, i32
  }
  func.func @transform_9(%arg0: i32) -> (i32, i32) {
    %c0_i32 = arith.constant 0 : i32
    %c0_i32_0 = arith.constant 0 : i32
    %c0_i32_1 = arith.constant 0 : i32
    return %c0_i32, %c0_i32_0 : i32, i32
  }
  func.func @transform_10(%arg0: i32) -> (i32, i32) {
    %c0_i32 = arith.constant 0 : i32
    %c0_i32_0 = arith.constant 0 : i32
    %c0_i32_1 = arith.constant 0 : i32
    return %c0_i32, %c0_i32_0 : i32, i32
  }
  func.func @transform_11(%arg0: i32) -> (i32, i32) {
    %c0_i32 = arith.constant 0 : i32
    %c0_i32_0 = arith.constant 0 : i32
    %c0_i32_1 = arith.constant 0 : i32
    return %c0_i32, %c0_i32_0 : i32, i32
  }
  func.func @transform_12(%arg0: i32) -> (i32, i32) {
    %c0_i32 = arith.constant 0 : i32
    %c0_i32_0 = arith.constant 0 : i32
    %c0_i32_1 = arith.constant 0 : i32
    return %c0_i32, %c0_i32_0 : i32, i32
  }
  func.func @transform_13(%arg0: i32) -> (i32, i32) {
    %c0_i32 = arith.constant 0 : i32
    %c0_i32_0 = arith.constant 0 : i32
    return %arg0, %c0_i32 : i32, i32
  }
}

</mosaic_0001>

<llo_original>
// kernel: _forward_impl.1
$region0: #{_forward_impl.1}
  #allocation0 [shape = 'u32[]', space=smem, size = 0x4, offset = 0x4, fixed_abs, tag = 'smem constant byte address 0x4 - core index']
  #allocation1 [shape = 'u32[144,128]{1,0:T(1,128)}', space=vmem, size = 0x12000, scoped, tag = 'internal scratch']
  %s0 = inlined_call_operand.vmem [shape: bf16[320,48], index: 0, kind: input, shape index: {}]
  %s1 = inlined_call_operand.vmem [shape: bf16[48,128], index: 1, kind: input, shape index: {}]
  %s2 = inlined_call_operand.vmem [shape: f32[1,128], index: 2, kind: input, shape index: {}]
  %s3 = inlined_call_operand.vmem [shape: f32[1,128], index: 3, kind: input, shape index: {}]
  %s4 = inlined_call_operand.vmem [shape: f32[1,128], index: 4, kind: input, shape index: {}]
  %s5 = inlined_call_operand.vmem [shape: bf16[128,128], index: 5, kind: input, shape index: {}]
  %s6 = inlined_call_operand.vmem [shape: f32[1,128], index: 6, kind: input, shape index: {}]
  %s7 = inlined_call_operand.vmem [shape: f32[1,128], index: 7, kind: input, shape index: {}]
  %s8 = inlined_call_operand.vmem [shape: f32[1,128], index: 8, kind: input, shape index: {}]
  %s9 = inlined_call_operand.vmem [shape: bf16[128,64], index: 9, kind: input, shape index: {}]
  %s10 = inlined_call_operand.vmem [shape: f32[1,64], index: 10, kind: input, shape index: {}]
  %s11 = inlined_call_operand.vmem [shape: f32[1,64], index: 11, kind: input, shape index: {}]
  %s12 = inlined_call_operand.vmem [shape: f32[1,64], index: 12, kind: input, shape index: {}]
  %s13 = inlined_call_operand.vmem [shape: f32[320,64], index: 13, kind: output, shape index: {}]
  %s14 = sld [smem:[#allocation0]]
  $region85: #{_forward_impl.1} parent=0
    _
  %s16 = ssub.s32 1, %s14
  %s17 = scalar_select 0, %s16, %s14
  loop: start=0, step=1, limit=6
  $region2: #{_forward_impl.1} parent=0 // loop_pre_header
    _
  $region3: #{_forward_impl.1} parent=0 // loop_header
    %s19 = sphi 0, %s23
    %p20 = scmp.ge.s32.totalorder %s19, 6
    %s29 = sphi 0, %s31
    %s32 = sphi 0, %s29
    %s33 = sphi 0, %s32
    %s49 = sphi 0, %s33
    %s53 = sphi 0, %s53
    %s55 = sphi 0, %s53
    %s56 = sphi 0, %s55
    %s70 = sphi 0, %s56
    %s74 = sphi 0, %s74
    %s76 = sphi 0, %s74
    %s77 = sphi 0, %s76
    %s91 = sphi 0, %s77
    %s95 = sphi 0, %s95
    %s97 = sphi 0, %s95
    %s98 = sphi 0, %s97
    %s112 = sphi 0, %s98
    %s116 = sphi 0, %s116
    %s118 = sphi 0, %s116
    %s119 = sphi 0, %s118
    %s133 = sphi 0, %s119
    %s137 = sphi 0, %s137
    %s139 = sphi 0, %s137
    %s140 = sphi 0, %s139
    %s154 = sphi 0, %s140
    %s158 = sphi 0, %s158
    %s160 = sphi 0, %s158
    %s161 = sphi 0, %s160
    %s175 = sphi 0, %s161
    %s179 = sphi 0, %s179
    %s181 = sphi 0, %s179
    %s182 = sphi 0, %s181
    %s196 = sphi 0, %s182
    %s200 = sphi 0, %s200
    %s202 = sphi 0, %s200
    %s203 = sphi 0, %s202
    %s217 = sphi 0, %s203
    %s221 = sphi 0, %s221
    %s223 = sphi 0, %s221
    %s224 = sphi 0, %s223
    %s238 = sphi 0, %s224
    %s242 = sphi 0, %s242
    %s244 = sphi 0, %s242
    %s245 = sphi 0, %s244
    %s259 = sphi 0, %s245
    %s263 = sphi 0, %s263
    %s265 = sphi 0, %s263
    %s266 = sphi 0, %s265
    %s280 = sphi 0, %s266
    %s284 = sphi 0, %s284
    %s286 = sphi 0, %s284
    %s287 = sphi 0, %s286
    %s301 = sphi 0, %s287
    %s307 = sphi 0, %s309
    %s310 = sphi 0, %s307
    %s311 = sphi 0, %s310
    %s327 = sphi 0, %s311
  $region4: #{_forward_impl.1} parent=0 // loop_header_branch
    %22 = sbr.rel (%p20) target = $region8
  $region5: #{_forward_impl.1} parent=0 // loop_body
    %s24 = ssub.s32 %s19, 1
    %s25 = ssub.s32 %s19, 2
    %s26 = sadd.s32 %s19, 1
    %s27 = ssub.s32 %s19, %s26
    %p28 = scmp.eq.s32.totalorder %s27, 0
    %s30 = sadd.s32 %s29, 1
    %s31 = scalar_select %p28, %s29, %s30
    %p34 = pneg %p28
    %p35 = scmp.eq.s32.totalorder %s19, 3
    %p36 = por %p34, %p35
    %p37 = scmp.ne.s32.totalorder %s29, %s32
    %p38 = scmp.eq.s32.totalorder %s19, 0
    %p39 = por %p37, %p38
    %p40 = scmp.ne.s32.totalorder %s29, %s32
    %p41 = scmp.eq.s32.totalorder %s24, 3
    %p42 = por %p40, %p41
    %p43 = scmp.ne.s32.totalorder %s32, %s33
    %p44 = scmp.eq.s32.totalorder %s24, 0
    %p45 = por %p43, %p44
    %p46 = scmp.ne.s32.totalorder %s32, %s33
    %p47 = scmp.eq.s32.totalorder %s25, 3
    %p48 = por %p46, %p47
    %p50 = scmp.ne.s32.totalorder %s33, %s49
    %p51 = scmp.eq.s32.totalorder %s25, 0
    %p52 = por %p50, %p51
    %s54 = sadd.s32 %s53, 1
    %p57 = scmp.eq.s32.totalorder %s19, 3
    %p58 = scmp.ne.s32.totalorder %s53, %s55
    %p59 = scmp.eq.s32.totalorder %s19, 0
    %p60 = por %p58, %p59
    %p61 = scmp.ne.s32.totalorder %s53, %s55
    %p62 = scmp.eq.s32.totalorder %s24, 3
    %p63 = por %p61, %p62
    %p64 = scmp.ne.s32.totalorder %s55, %s56
    %p65 = scmp.eq.s32.totalorder %s24, 0
    %p66 = por %p64, %p65
    %p67 = scmp.ne.s32.totalorder %s55, %s56
    %p68 = scmp.eq.s32.totalorder %s25, 3
    %p69 = por %p67, %p68
    %p71 = scmp.ne.s32.totalorder %s56, %s70
    %p72 = scmp.eq.s32.totalorder %s25, 0
    %p73 = por %p71, %p72
    %s75 = sadd.s32 %s74, 1
    %p78 = scmp.eq.s32.totalorder %s19, 3
    %p79 = scmp.ne.s32.totalorder %s74, %s76
    %p80 = scmp.eq.s32.totalorder %s19, 0
    %p81 = por %p79, %p80
    %p82 = scmp.ne.s32.totalorder %s74, %s76
    %p83 = scmp.eq.s32.totalorder %s24, 3
    %p84 = por %p82, %p83
    %p85 = scmp.ne.s32.totalorder %s76, %s77
    %p86 = scmp.eq.s32.totalorder %s24, 0
    %p87 = por %p85, %p86
    %p88 = scmp.ne.s32.totalorder %s76, %s77
    %p89 = scmp.eq.s32.totalorder %s25, 3
    %p90 = por %p88, %p89
    %p92 = scmp.ne.s32.totalorder %s77, %s91
    %p93 = scmp.eq.s32.totalorder %s25, 0
    %p94 = por %p92, %p93
    %s96 = sadd.s32 %s95, 1
    %p99 = scmp.eq.s32.totalorder %s19, 3
    %p100 = scmp.ne.s32.totalorder %s95, %s97
    %p101 = scmp.eq.s32.totalorder %s19, 0
    %p102 = por %p100, %p101
    %p103 = scmp.ne.s32.totalorder %s95, %s97
    %p104 = scmp.eq.s32.totalorder %s24, 3
    %p105 = por %p103, %p104
    %p106 = scmp.ne.s32.totalorder %s97, %s98
    %p107 = scmp.eq.s32.totalorder %s24, 0
    %p108 = por %p106, %p107
    %p109 = scmp.ne.s32.totalorder %s97, %s98
    %p110 = scmp.eq.s32.totalorder %s25, 3
    %p111 = por %p109, %p110
    %p113 = scmp.ne.s32.totalorder %s98, %s112
    %p114 = scmp.eq.s32.totalorder %s25, 0
    %p115 = por %p113, %p114
    %s117 = sadd.s32 %s116, 1
    %p120 = scmp.eq.s32.totalorder %s19, 3
    %p121 = scmp.ne.s32.totalorder %s116, %s118
    %p122 = scmp.eq.s32.totalorder %s19, 0
    %p123 = por %p121, %p122
    %p124 = scmp.ne.s32.totalorder %s116, %s118
    %p125 = scmp.eq.s32.totalorder %s24, 3
    %p126 = por %p124, %p125
    %p127 = scmp.ne.s32.totalorder %s118, %s119
    %p128 = scmp.eq.s32.totalorder %s24, 0
    %p129 = por %p127, %p128
    %p130 = scmp.ne.s32.totalorder %s118, %s119
    %p131 = scmp.eq.s32.totalorder %s25, 3
    %p132 = por %p130, %p131
    %p134 = scmp.ne.s32.totalorder %s119, %s133
    %p135 = scmp.eq.s32.totalorder %s25, 0
    %p136 = por %p134, %p135
    %s138 = sadd.s32 %s137, 1
    %p141 = scmp.eq.s32.totalorder %s19, 3
    %p142 = scmp.ne.s32.totalorder %s137, %s139
    %p143 = scmp.eq.s32.totalorder %s19, 0
    %p144 = por %p142, %p143
    %p145 = scmp.ne.s32.totalorder %s137, %s139
    %p146 = scmp.eq.s32.totalorder %s24, 3
    %p147 = por %p145, %p146
    %p148 = scmp.ne.s32.totalorder %s139, %s140
    %p149 = scmp.eq.s32.totalorder %s24, 0
    %p150 = por %p148, %p149
    %p151 = scmp.ne.s32.totalorder %s139, %s140
    %p152 = scmp.eq.s32.totalorder %s25, 3
    %p153 = por %p151, %p152
    %p155 = scmp.ne.s32.totalorder %s140, %s154
    %p156 = scmp.eq.s32.totalorder %s25, 0
    %p157 = por %p155, %p156
    %s159 = sadd.s32 %s158, 1
    %p162 = scmp.eq.s32.totalorder %s19, 3
    %p163 = scmp.ne.s32.totalorder %s158, %s160
    %p164 = scmp.eq.s32.totalorder %s19, 0
    %p165 = por %p163, %p164
    %p166 = scmp.ne.s32.totalorder %s158, %s160
    %p167 = scmp.eq.s32.totalorder %s24, 3
    %p168 = por %p166, %p167
    %p169 = scmp.ne.s32.totalorder %s160, %s161
    %p170 = scmp.eq.s32.totalorder %s24, 0
    %p171 = por %p169, %p170
    %p172 = scmp.ne.s32.totalorder %s160, %s161
    %p173 = scmp.eq.s32.totalorder %s25, 3
    %p174 = por %p172, %p173
    %p176 = scmp.ne.s32.totalorder %s161, %s175
    %p177 = scmp.eq.s32.totalorder %s25, 0
    %p178 = por %p176, %p177
    %s180 = sadd.s32 %s179, 1
    %p183 = scmp.eq.s32.totalorder %s19, 3
    %p184 = scmp.ne.s32.totalorder %s179, %s181
    %p185 = scmp.eq.s32.totalorder %s19, 0
    %p186 = por %p184, %p185
    %p187 = scmp.ne.s32.totalorder %s179, %s181
    %p188 = scmp.eq.s32.totalorder %s24, 3
    %p189 = por %p187, %p188
    %p190 = scmp.ne.s32.totalorder %s181, %s182
    %p191 = scmp.eq.s32.totalorder %s24, 0
    %p192 = por %p190, %p191
    %p193 = scmp.ne.s32.totalorder %s181, %s182
    %p194 = scmp.eq.s32.totalorder %s25, 3
    %p195 = por %p193, %p194
    %p197 = scmp.ne.s32.totalorder %s182, %s196
    %p198 = scmp.eq.s32.totalorder %s25, 0
    %p199 = por %p197, %p198
    %s201 = sadd.s32 %s200, 1
    %p204 = scmp.eq.s32.totalorder %s19, 3
    %p205 = scmp.ne.s32.totalorder %s200, %s202
    %p206 = scmp.eq.s32.totalorder %s19, 0
    %p207 = por %p205, %p206
    %p208 = scmp.ne.s32.totalorder %s200, %s202
    %p209 = scmp.eq.s32.totalorder %s24, 3
    %p210 = por %p208, %p209
    %p211 = scmp.ne.s32.totalorder %s202, %s203
    %p212 = scmp.eq.s32.totalorder %s24, 0
    %p213 = por %p211, %p212
    %p214 = scmp.ne.s32.totalorder %s202, %s203
    %p215 = scmp.eq.s32.totalorder %s25, 3
    %p216 = por %p214, %p215
    %p218 = scmp.ne.s32.totalorder %s203, %s217
    %p219 = scmp.eq.s32.totalorder %s25, 0
    %p220 = por %p218, %p219
    %s222 = sadd.s32 %s221, 1
    %p225 = scmp.eq.s32.totalorder %s19, 3
    %p226 = scmp.ne.s32.totalorder %s221, %s223
    %p227 = scmp.eq.s32.totalorder %s19, 0
    %p228 = por %p226, %p227
    %p229 = scmp.ne.s32.totalorder %s221, %s223
    %p230 = scmp.eq.s32.totalorder %s24, 3
    %p231 = por %p229, %p230
    %p232 = scmp.ne.s32.totalorder %s223, %s224
    %p233 = scmp.eq.s32.totalorder %s24, 0
    %p234 = por %p232, %p233
    %p235 = scmp.ne.s32.totalorder %s223, %s224
    %p236 = scmp.eq.s32.totalorder %s25, 3
    %p237 = por %p235, %p236
    %p239 = scmp.ne.s32.totalorder %s224, %s238
    %p240 = scmp.eq.s32.totalorder %s25, 0
    %p241 = por %p239, %p240
    %s243 = sadd.s32 %s242, 1
    %p246 = scmp.eq.s32.totalorder %s19, 3
    %p247 = scmp.ne.s32.totalorder %s242, %s244
    %p248 = scmp.eq.s32.totalorder %s19, 0
    %p249 = por %p247, %p248
    %p250 = scmp.ne.s32.totalorder %s242, %s244
    %p251 = scmp.eq.s32.totalorder %s24, 3
    %p252 = por %p250, %p251
    %p253 = scmp.ne.s32.totalorder %s244, %s245
    %p254 = scmp.eq.s32.totalorder %s24, 0
    %p255 = por %p253, %p254
    %p256 = scmp.ne.s32.totalorder %s244, %s245
    %p257 = scmp.eq.s32.totalorder %s25, 3
    %p258 = por %p256, %p257
    %p260 = scmp.ne.s32.totalorder %s245, %s259
    %p261 = scmp.eq.s32.totalorder %s25, 0
    %p262 = por %p260, %p261
    %s264 = sadd.s32 %s263, 1
    %p267 = scmp.eq.s32.totalorder %s19, 3
    %p268 = scmp.ne.s32.totalorder %s263, %s265
    %p269 = scmp.eq.s32.totalorder %s19, 0
    %p270 = por %p268, %p269
    %p271 = scmp.ne.s32.totalorder %s263, %s265
    %p272 = scmp.eq.s32.totalorder %s24, 3
    %p273 = por %p271, %p272
    %p274 = scmp.ne.s32.totalorder %s265, %s266
    %p275 = scmp.eq.s32.totalorder %s24, 0
    %p276 = por %p274, %p275
    %p277 = scmp.ne.s32.totalorder %s265, %s266
    %p278 = scmp.eq.s32.totalorder %s25, 3
    %p279 = por %p277, %p278
    %p281 = scmp.ne.s32.totalorder %s266, %s280
    %p282 = scmp.eq.s32.totalorder %s25, 0
    %p283 = por %p281, %p282
    %s285 = sadd.s32 %s284, 1
    %p288 = scmp.eq.s32.totalorder %s19, 3
    %p289 = scmp.ne.s32.totalorder %s284, %s286
    %p290 = scmp.eq.s32.totalorder %s19, 0
    %p291 = por %p289, %p290
    %p292 = scmp.ne.s32.totalorder %s284, %s286
    %p293 = scmp.eq.s32.totalorder %s24, 3
    %p294 = por %p292, %p293
    %p295 = scmp.ne.s32.totalorder %s286, %s287
    %p296 = scmp.eq.s32.totalorder %s24, 0
    %p297 = por %p295, %p296
    %p298 = scmp.ne.s32.totalorder %s286, %s287
    %p299 = scmp.eq.s32.totalorder %s25, 3
    %p300 = por %p298, %p299
    %p302 = scmp.ne.s32.totalorder %s287, %s301
    %p303 = scmp.eq.s32.totalorder %s25, 0
    %p304 = por %p302, %p303
    %s305 = ssub.s32 %s19, %s26
    %p306 = scmp.eq.s32.totalorder %s305, 0
    %s308 = sadd.s32 %s307, 1
    %s309 = scalar_select %p306, %s307, %s308
    %p312 = pneg %p306
    %p313 = scmp.eq.s32.totalorder %s19, 3
    %p314 = por %p312, %p313
    %p315 = scmp.ne.s32.totalorder %s307, %s310
    %p316 = scmp.eq.s32.totalorder %s19, 0
    %p317 = por %p315, %p316
    %p318 = scmp.ne.s32.totalorder %s307, %s310
    %p319 = scmp.eq.s32.totalorder %s24, 3
    %p320 = por %p318, %p319
    %p321 = scmp.ne.s32.totalorder %s310, %s311
    %p322 = scmp.eq.s32.totalorder %s24, 0
    %p323 = por %p321, %p322
    %p324 = scmp.ne.s32.totalorder %s310, %s311
    %p325 = scmp.eq.s32.totalorder %s25, 3
    %p326 = por %p324, %p325
    %p328 = scmp.ne.s32.totalorder %s311, %s327
    %p329 = scmp.eq.s32.totalorder %s25, 0
    %p330 = por %p328, %p329
    %p331 = scmp.le.s32.totalorder 1, %s19
    %p332 = scmp.lt.s32.totalorder %s19, 5
    %p333 = pnand %p331, %p332
    %p334 = pneg %p333
    // Predicated region
    $region9: #{_forward_impl.1} parent=5 // pred_check
      _
    $region10: #{_forward_impl.1} parent=5 // pred_check_branch
      %336 = sbr.rel (%p333) target = $region12
    $region11: #{_forward_impl.1} parent=5 // pred_region
      %s337 = ssub.s32 %s19, 1
      // Predicated region
      $region13: #{_forward_impl.1} parent=11 // pred_check
        %p338 = pneg %p66
      $region14: #{_forward_impl.1} parent=11 // pred_check_branch
        %340 = sbr.rel (%p338) target = $region16
      $region15: #{_forward_impl.1} parent=11 // pred_region
        _
      $region16: #{_forward_impl.1} parent=11 // pred_fallthru
        _
      // Predicated region
      $region17: #{_forward_impl.1} parent=11 // pred_check
        %p341 = pneg %p87
      $region18: #{_forward_impl.1} parent=11 // pred_check_branch
        %343 = sbr.rel (%p341) target = $region20
      $region19: #{_forward_impl.1} parent=11 // pred_region
        _
      $region20: #{_forward_impl.1} parent=11 // pred_fallthru
        _
      // Predicated region
      $region21: #{_forward_impl.1} parent=11 // pred_check
        %p344 = pneg %p108
      $region22: #{_forward_impl.1} parent=11 // pred_check_branch
        %346 = sbr.rel (%p344) target = $region24
      $region23: #{_forward_impl.1} parent=11 // pred_region
        _
      $region24: #{_forward_impl.1} parent=11 // pred_fallthru
        _
      // Predicated region
      $region25: #{_forward_impl.1} parent=11 // pred_check
        %p347 = pneg %p129
      $region26: #{_forward_impl.1} parent=11 // pred_check_branch
        %349 = sbr.rel (%p347) target = $region28
      $region27: #{_forward_impl.1} parent=11 // pred_region
        _
      $region28: #{_forward_impl.1} parent=11 // pred_fallthru
        _
      // Predicated region
      $region29: #{_forward_impl.1} parent=11 // pred_check
        %p350 = pneg %p150
      $region30: #{_forward_impl.1} parent=11 // pred_check_branch
        %352 = sbr.rel (%p350) target = $region32
      $region31: #{_forward_impl.1} parent=11 // pred_region
        _
      $region32: #{_forward_impl.1} parent=11 // pred_fallthru
        _
      // Predicated region
      $region33: #{_forward_impl.1} parent=11 // pred_check
        %p353 = pneg %p171
      $region34: #{_forward_impl.1} parent=11 // pred_check_branch
        %355 = sbr.rel (%p353) target = $region36
      $region35: #{_forward_impl.1} parent=11 // pred_region
        _
      $region36: #{_forward_impl.1} parent=11 // pred_fallthru
        _
      // Predicated region
      $region37: #{_forward_impl.1} parent=11 // pred_check
        %p356 = pneg %p192
      $region38: #{_forward_impl.1} parent=11 // pred_check_branch
        %358 = sbr.rel (%p356) target = $region40
      $region39: #{_forward_impl.1} parent=11 // pred_region
        _
      $region40: #{_forward_impl.1} parent=11 // pred_fallthru
        _
      // Predicated region
      $region41: #{_forward_impl.1} parent=11 // pred_check
        %p359 = pneg %p213
      $region42: #{_forward_impl.1} parent=11 // pred_check_branch
        %361 = sbr.rel (%p359) target = $region44
      $region43: #{_forward_impl.1} parent=11 // pred_region
        _
      $region44: #{_forward_impl.1} parent=11 // pred_fallthru
        _
      // Predicated region
      $region45: #{_forward_impl.1} parent=11 // pred_check
        %p362 = pneg %p234
      $region46: #{_forward_impl.1} parent=11 // pred_check_branch
        %364 = sbr.rel (%p362) target = $region48
      $region47: #{_forward_impl.1} parent=11 // pred_region
        _
      $region48: #{_forward_impl.1} parent=11 // pred_fallthru
        _
      // Predicated region
      $region49: #{_forward_impl.1} parent=11 // pred_check
        %p365 = pneg %p255
      $region50: #{_forward_impl.1} parent=11 // pred_check_branch
        %367 = sbr.rel (%p365) target = $region52
      $region51: #{_forward_impl.1} parent=11 // pred_region
        _
      $region52: #{_forward_impl.1} parent=11 // pred_fallthru
        _
      // Predicated region
      $region53: #{_forward_impl.1} parent=11 // pred_check
        %p368 = pneg %p276
      $region54: #{_forward_impl.1} parent=11 // pred_check_branch
        %370 = sbr.rel (%p368) target = $region56
      $region55: #{_forward_impl.1} parent=11 // pred_region
        _
      $region56: #{_forward_impl.1} parent=11 // pred_fallthru
        _
      // Predicated region
      $region57: #{_forward_impl.1} parent=11 // pred_check
        %p371 = pneg %p297
      $region58: #{_forward_impl.1} parent=11 // pred_check_branch
        %373 = sbr.rel (%p371) target = $region60
      $region59: #{_forward_impl.1} parent=11 // pred_region
        _
      $region60: #{_forward_impl.1} parent=11 // pred_fallthru
        _
    $region12: #{_forward_impl.1} parent=5 // pred_fallthru
      _
    %p374 = scmp.lt.s32.totalorder %s19, 4
    // Predicated region
    $region61: #{_forward_impl.1} parent=5 // pred_check
      %p375 = pneg %p374
    $region62: #{_forward_impl.1} parent=5 // pred_check_branch
      %377 = sbr.rel (%p375) target = $region64
    $region63: #{_forward_impl.1} parent=5 // pred_region
      // Predicated region
      $region65: #{_forward_impl.1} parent=63 // pred_check
        %p378 = pneg %p39
      $region66: #{_forward_impl.1} parent=63 // pred_check_branch
        %380 = sbr.rel (%p378) target = $region68
      $region67: #{_forward_impl.1} parent=63 // pred_region
        %s381 = smul.u32 10, %s19
        %p382 = scmp.lt.s32.totalorder %s381, 39
        %s383 = scalar_select %p382, %s381, 39
        %s384 = smul.addr %s383, 4
        %s385 = scalar_lea.vmem %s0, %s384
        %s386 = smul.u32 10, %s19
      $region68: #{_forward_impl.1} parent=63 // pred_fallthru
        _
    $region64: #{_forward_impl.1} parent=5 // pred_fallthru
      _
    %p387 = scmp.le.s32.totalorder 1, %s19
    %p388 = scmp.lt.s32.totalorder %s19, 5
    %p389 = pnand %p387, %p388
    %p390 = pneg %p389
    // Predicated region
    $region69: #{_forward_impl.1} parent=5 // pred_check
      _
    $region70: #{_forward_impl.1} parent=5 // pred_check_branch
      %392 = sbr.rel (%p389) target = $region72
    $region71: #{_forward_impl.1} parent=5 // pred_region
      %s393 = ssub.s32 %s19, 1
      %s394 = smul.u32 10, %s24
      %p395 = scmp.lt.s32.totalorder %s394, 39
      %s396 = scalar_select %p395, %s394, 39
      %s397 = smul.addr %s396, 4
      %s398 = scalar_lea.vmem %s0, %s397
      %p399 = pneg %p45
      %p400 = pneg %p42
      %p401 = pneg %p66
      %p402 = pneg %p63
      %p403 = pneg %p87
      %p404 = pneg %p84
      %p405 = pneg %p108
      %p406 = pneg %p105
      %p407 = pneg %p129
      %p408 = pneg %p126
      %p409 = pneg %p150
      %p410 = pneg %p147
      %p411 = pneg %p171
      %p412 = pneg %p168
      %p413 = pneg %p192
      %p414 = pneg %p189
      %p415 = pneg %p213
      %p416 = pneg %p210
      %p417 = pneg %p234
      %p418 = pneg %p231
      %p419 = pneg %p255
      %p420 = pneg %p252
      %p421 = pneg %p276
      %p422 = pneg %p273
      %p423 = pneg %p297
      %p424 = pneg %p294
      %p425 = pneg %p323
      %p426 = pneg %p320
      %s427 = smul.u32 10, %s24
      %p428 = scmp.lt.s32.totalorder %s427, 39
      %s429 = scalar_select %p428, %s427, 39
      %s430 = smul.addr %s429, 8
      %s431 = scalar_lea.vmem %s13, %s430
      %s432 = smul.u32 10, %s24
      %p433 = scmp.lt.s32.totalorder %s432, 39
      %s434 = scalar_select %p433, %s432, 39
      %s435 = smul.addr %s434, 4
      %s436 = scalar_lea.vmem %s0, %s435
      %s437 = smul.u32 10, %s24
      %s438 = smul.u32 10, %s24
      %p439 = scmp.lt.s32.totalorder %s438, 39
      %s440 = scalar_select %p439, %s438, 39
      %s441 = smul.addr %s440, 8
      %s442 = scalar_lea.vmem %s13, %s441
      %s443 = smul.u32 10, %s24
      %v445 = vld [vmem:[%s436] sm:$0xf]
      %v446 = vld [vmem:[%s436 + $0x4] sm:$0xf]
      %v447 = vld [vmem:[%s436 + $0x8] sm:$0xf]
      %v448 = vld [vmem:[%s436 + $0xc] sm:$0xf]
      %v449 = vld [vmem:[%s436 + $0x10] sm:$0xf]
      %v450 = vld [vmem:[%s436 + $0x14] sm:$0xf]
      %v451 = vld [vmem:[%s436 + $0x18] sm:$0xf]
      %v452 = vld [vmem:[%s436 + $0x1c] sm:$0xf]
      %v453 = vld [vmem:[%s436 + $0x20] sm:$0xf]
      %v454 = vld [vmem:[%s436 + $0x24] sm:$0xf]
      %v455 = vld [vmem:[%s1] sm:$0xf]
      %v456 = vld [vmem:[%s1 + $0x4] sm:$0xf]
      %v457 = vld [vmem:[%s1 + $0x8] sm:$0xf]
      %v458 = vld [vmem:[%s1 + $0xc] sm:$0xf]
      %v459 = vld [vmem:[%s1 + $0x10] sm:$0xf]
      %v460 = vld [vmem:[%s1 + $0x14] sm:$0xf]
      %v461 = vld [vmem:[%s2] sm:$0x1]
      %v463 = vlaneseq
      %v464 = vshrl.u32 %v463, 7
      %v465 = vsub.s32 0, %v464
      %v466 = vrot.slane %v461, %v465
      %v478 = vunpack.c.l.b16 %v445
      %v479 = vunpack.c.l.b16 %v446
      %v480 = vunpack.c.l.b16 %v447
      %v481 = vunpack.c.l.b16 %v448
      %v482 = vunpack.c.l.b16 %v449
      %v483 = vunpack.c.l.b16 %v450
      %v484 = vunpack.c.l.b16 %v451
      %v485 = vunpack.c.l.b16 %v452
      %v486 = vunpack.c.l.b16 %v453
      %v487 = vunpack.c.l.b16 %v454
      %v488 = vpack.c.b16 %v479, %v478
      %v489 = vpack.c.b16 %v481, %v480
      %v490 = vpack.c.b16 %v483, %v482
      %v491 = vpack.c.b16 %v485, %v484
      %v492 = vpack.c.b16 %v487, %v486
      %v499 = vunpack.c.l.b16 %v455
      %v500 = vunpack.c.l.b16 %v456
      %v501 = vunpack.c.l.b16 %v457
      %v502 = vunpack.c.l.b16 %v458
      %v503 = vunpack.c.l.b16 %v459
      %v504 = vunpack.c.l.b16 %v460
      %v505 = vpack.c.b16 %v500, %v499
      %v506 = vpack.c.b16 %v502, %v501
      %v507 = vpack.c.b16 %v504, %v503
      %vm511 = vcmask 392192
      %v513 = vsel %vm511, %v488, 0
      %v516 = vsel %vm511, %v489, 0
      %v519 = vsel %vm511, %v490, 0
      %v522 = vsel %vm511, %v491, 0
      %v525 = vsel %vm511, %v492, 0
      %527 = vmatprep.subr.bf16.mxu0 0
      %528 = vmatpush1.bf16.msra.mxu0 %v505
      %529 = vmatprep.subr.bf16.mxu0 0
      %530 = vmatpush1.bf16.msra.mxu0 %v506
      %531 = vmatprep.subr.bf16.mxu0 0
      %532 = vmatpush1.bf16.msra.mxu0 %v507
      %533 = vmatprep.subr.bf16.mxu0 0
      %534 = vmatpush1.bf16.msra.mxu0 0
      %535 = vmatprep.subr.bf16.mxu0 0
      %536 = vmatpush1.bf16.msra.mxu0 0
      %537 = vmatprep.subr.bf16.mxu0 0
      %538 = vmatpush1.bf16.msra.mxu0 0
      %539 = vmatprep.subr.bf16.mxu0 0
      %540 = vmatpush1.bf16.msra.mxu0 0
      %541 = vmatprep.subr.bf16.mxu0 0
      %542 = vmatpush1.bf16.msra.mxu0 0
      %543 = vmatprep.subr.bf16.mxu0 0
      %544 = vmatpush1.bf16.msra.mxu0 0
      %545 = vmatprep.subr.bf16.mxu0 0
      %546 = vmatpush1.bf16.msra.mxu0 0
      %547 = vmatprep.subr.bf16.mxu0 0
      %548 = vmatpush1.bf16.msra.mxu0 0
      %549 = vmatprep.subr.bf16.mxu0 0
      %550 = vmatpush1.bf16.msra.mxu0 0
      %551 = vmatprep.subr.bf16.mxu0 0
      %552 = vmatpush1.bf16.msra.mxu0 0
      %553 = vmatprep.subr.bf16.mxu0 0
      %554 = vmatpush1.bf16.msra.mxu0 0
      %555 = vmatprep.subr.bf16.mxu0 0
      %556 = vmatpush1.bf16.msra.mxu0 0
      %557 = vmatprep.subr.bf16.mxu0 0
      %558 = vmatpush1.bf16.msra.mxu0 0
      %559 = vmatprep.mubr.bf16.mxu0 0
      %560 = vmatmul.mubr.bf16.gmra.mrb[0].mxu0 %v513
      %v561 = vpop.f32.mrb[0].mxu0
      %v562 = vadd.f32 %v466, %v561
      %v563 = vpop.f32.mrb[0].mxu0
      %v564 = vpop.f32.mrb[0].mxu0
      %v565 = vadd.f32 %v466, %v564
      %v566 = vpop.f32.mrb[0].mxu0
      %567 = vmatprep.mubr.bf16.mxu0 0
      %568 = vmatmul.mubr.bf16.gmra.mrb[0].mxu0 %v516
      %v569 = vpop.f32.mrb[0].mxu0
      %v570 = vadd.f32 %v466, %v569
      %v571 = vpop.f32.mrb[0].mxu0
      %v572 = vpop.f32.mrb[0].mxu0
      %v573 = vadd.f32 %v466, %v572
      %v574 = vpop.f32.mrb[0].mxu0
      %575 = vmatprep.mubr.bf16.mxu0 0
      %576 = vmatmul.mubr.bf16.gmra.mrb[0].mxu0 %v519
      %v577 = vpop.f32.mrb[0].mxu0
      %v578 = vadd.f32 %v466, %v577
      %v579 = vpop.f32.mrb[0].mxu0
      %v580 = vpop.f32.mrb[0].mxu0
      %v581 = vadd.f32 %v466, %v580
      %v582 = vpop.f32.mrb[0].mxu0
      %583 = vmatprep.mubr.bf16.mxu0 0
      %584 = vmatmul.mubr.bf16.gmra.mrb[0].mxu0 %v522
      %v585 = vpop.f32.mrb[0].mxu0
      %v586 = vadd.f32 %v466, %v585
      %v587 = vpop.f32.mrb[0].mxu0
      %v588 = vpop.f32.mrb[0].mxu0
      %v589 = vadd.f32 %v466, %v588
      %v590 = vpop.f32.mrb[0].mxu0
      %591 = vmatprep.mubr.bf16.mxu0 0
      %592 = vmatmul.mubr.bf16.gmra.mrb[0].mxu0 %v525
      %v593 = vpop.f32.mrb[0].mxu0
      %v594 = vadd.f32 %v466, %v593
      %v595 = vpop.f32.mrb[0].mxu0
      %v596 = vpop.f32.mrb[0].mxu0
      %v597 = vadd.f32 %v466, %v596
      %v598 = vpop.f32.mrb[0].mxu0
      %599 = vdwg.mxu0
      %600 = vadd.xlane.f32.xlu0 %v562
      %v601 = vpop.xlane.xlu0 %600
      %602 = vadd.xlane.f32.xlu0 %v565
      %v603 = vpop.xlane.xlu0 %602
      %604 = vadd.xlane.f32.xlu0 %v570
      %v605 = vpop.xlane.xlu0 %604
      %606 = vadd.xlane.f32.xlu0 %v573
      %v607 = vpop.xlane.xlu0 %606
      %608 = vadd.xlane.f32.xlu0 %v578
      %v609 = vpop.xlane.xlu0 %608
      %610 = vadd.xlane.f32.xlu0 %v581
      %v611 = vpop.xlane.xlu0 %610
      %612 = vadd.xlane.f32.xlu0 %v586
      %v613 = vpop.xlane.xlu0 %612
      %614 = vadd.xlane.f32.xlu0 %v589
      %v615 = vpop.xlane.xlu0 %614
      %616 = vadd.xlane.f32.xlu0 %v594
      %v617 = vpop.xlane.xlu0 %616
      %618 = vadd.xlane.f32.xlu0 %v597
      %v619 = vpop.xlane.xlu0 %618
      %v620 = vrcp.pop 128.0
      %v621 = vmul.f32 %v601, %v620
      %v622 = vmul.f32 %v603, %v620
      %v623 = vmul.f32 %v605, %v620
      %v624 = vmul.f32 %v607, %v620
      %v625 = vmul.f32 %v609, %v620
      %v626 = vmul.f32 %v611, %v620
      %v627 = vmul.f32 %v613, %v620
      %v628 = vmul.f32 %v615, %v620
      %v629 = vmul.f32 %v617, %v620
      %v630 = vmul.f32 %v619, %v620
      %v631 = vsub.f32 %v562, %v621
      %v632 = vsub.f32 %v565, %v622
      %v633 = vsub.f32 %v570, %v623
      %v634 = vsub.f32 %v573, %v624
      %v635 = vsub.f32 %v578, %v625
      %v636 = vsub.f32 %v581, %v626
      %v637 = vsub.f32 %v586, %v627
      %v638 = vsub.f32 %v589, %v628
      %v639 = vsub.f32 %v594, %v629
      %v640 = vsub.f32 %v597, %v630
      %v641 = vmul.f32 %v631, %v631
      %v642 = vmul.f32 %v632, %v632
      %v643 = vmul.f32 %v633, %v633
      %v644 = vmul.f32 %v634, %v634
      %v645 = vmul.f32 %v635, %v635
      %v646 = vmul.f32 %v636, %v636
      %v647 = vmul.f32 %v637, %v637
      %v648 = vmul.f32 %v638, %v638
      %v649 = vmul.f32 %v639, %v639
      %v650 = vmul.f32 %v640, %v640
      %651 = vadd.xlane.f32.xlu0 %v641
      %v652 = vpop.xlane.xlu0 %651
      %653 = vadd.xlane.f32.xlu0 %v642
      %v654 = vpop.xlane.xlu0 %653
      %655 = vadd.xlane.f32.xlu0 %v643
      %v656 = vpop.xlane.xlu0 %655
      %657 = vadd.xlane.f32.xlu0 %v644
      %v658 = vpop.xlane.xlu0 %657
      %659 = vadd.xlane.f32.xlu0 %v645
      %v660 = vpop.xlane.xlu0 %659
      %661 = vadd.xlane.f32.xlu0 %v646
      %v662 = vpop.xlane.xlu0 %661
      %663 = vadd.xlane.f32.xlu0 %v647
      %v664 = vpop.xlane.xlu0 %663
      %665 = vadd.xlane.f32.xlu0 %v648
      %v666 = vpop.xlane.xlu0 %665
      %667 = vadd.xlane.f32.xlu0 %v649
      %v668 = vpop.xlane.xlu0 %667
      %669 = vadd.xlane.f32.xlu0 %v650
      %v670 = vpop.xlane.xlu0 %669
      %v671 = vmul.f32 %v652, %v620
      %v672 = vmul.f32 %v654, %v620
      %v673 = vmul.f32 %v656, %v620
      %v674 = vmul.f32 %v658, %v620
      %v675 = vmul.f32 %v660, %v620
      %v676 = vmul.f32 %v662, %v620
      %v677 = vmul.f32 %v664, %v620
      %v678 = vmul.f32 %v666, %v620
      %v679 = vmul.f32 %v668, %v620
      %v680 = vmul.f32 %v670, %v620
      %v681 = vld [vmem:[%s3] sm:$0x1]
      %v682 = vadd.f32 %v671, 1e-05
      %v683 = vadd.f32 %v672, 1e-05
      %v684 = vadd.f32 %v673, 1e-05
      %v685 = vadd.f32 %v674, 1e-05
      %v686 = vadd.f32 %v675, 1e-05
      %v687 = vadd.f32 %v676, 1e-05
      %v688 = vadd.f32 %v677, 1e-05
      %v689 = vadd.f32 %v678, 1e-05
      %v690 = vadd.f32 %v679, 1e-05
      %v691 = vadd.f32 %v680, 1e-05
      %v692 = vrsqrt.pop %v682
      %v693 = vrsqrt.pop %v683
      %v694 = vrsqrt.pop %v684
      %v695 = vrsqrt.pop %v685
      %v696 = vrsqrt.pop %v686
      %v697 = vrsqrt.pop %v687
      %v698 = vrsqrt.pop %v688
      %v699 = vrsqrt.pop %v689
      %v700 = vrsqrt.pop %v690
      %v701 = vrsqrt.pop %v691
      %v703 = vlaneseq
      %v704 = vshrl.u32 %v703, 7
      %v705 = vsub.s32 0, %v704
      %v706 = vrot.slane %v681, %v705
      %v708 = vmul.f32 %v706, %v692
      %v709 = vmul.f32 %v706, %v693
      %v710 = vmul.f32 %v706, %v694
      %v711 = vmul.f32 %v706, %v695
      %v712 = vmul.f32 %v706, %v696
      %v713 = vmul.f32 %v706, %v697
      %v714 = vmul.f32 %v706, %v698
      %v715 = vmul.f32 %v706, %v699
      %v716 = vmul.f32 %v706, %v700
      %v717 = vmul.f32 %v706, %v701
      %v718 = vmul.f32 %v631, %v708
      %v719 = vmul.f32 %v632, %v709
      %v720 = vmul.f32 %v633, %v710
      %v721 = vmul.f32 %v634, %v711
      %v722 = vmul.f32 %v635, %v712
      %v723 = vmul.f32 %v636, %v713
      %v724 = vmul.f32 %v637, %v714
      %v725 = vmul.f32 %v638, %v715
      %v726 = vmul.f32 %v639, %v716
      %v727 = vmul.f32 %v640, %v717
      %v728 = vld [vmem:[%s4] sm:$0x1]
      %v730 = vlaneseq
      %v731 = vshrl.u32 %v730, 7
      %v732 = vsub.s32 0, %v731
      %v733 = vrot.slane %v728, %v732
      %v735 = vadd.f32 %v718, %v733
      %v736 = vadd.f32 %v719, %v733
      %v737 = vadd.f32 %v720, %v733
      %v738 = vadd.f32 %v721, %v733
      %v739 = vadd.f32 %v722, %v733
      %v740 = vadd.f32 %v723, %v733
      %v741 = vadd.f32 %v724, %v733
      %v742 = vadd.f32 %v725, %v733
      %v743 = vadd.f32 %v726, %v733
      %v744 = vadd.f32 %v727, %v733
      %v745 = vmax.f32 %v735, 0.0
      %v746 = vmax.f32 %v736, 0.0
      %v747 = vmax.f32 %v737, 0.0
      %v748 = vmax.f32 %v738, 0.0
      %v749 = vmax.f32 %v739, 0.0
      %v750 = vmax.f32 %v740, 0.0
      %v751 = vmax.f32 %v741, 0.0
      %v752 = vmax.f32 %v742, 0.0
      %v753 = vmax.f32 %v743, 0.0
      %v754 = vmax.f32 %v744, 0.0
      %v755 = vpack.c.bf16 %v746, %v745
      %v756 = vpack.c.bf16 %v748, %v747
      %v757 = vpack.c.bf16 %v750, %v749
      %v758 = vpack.c.bf16 %v752, %v751
      %v759 = vpack.c.bf16 %v754, %v753
      %v760 = vld [vmem:[%s5] sm:$0xf]
      %v761 = vld [vmem:[%s5 + $0x4] sm:$0xf]
      %v762 = vld [vmem:[%s5 + $0x8] sm:$0xf]
      %v763 = vld [vmem:[%s5 + $0xc] sm:$0xf]
      %v764 = vld [vmem:[%s5 + $0x10] sm:$0xf]
      %v765 = vld [vmem:[%s5 + $0x14] sm:$0xf]
      %v766 = vld [vmem:[%s5 + $0x18] sm:$0xf]
      %v767 = vld [vmem:[%s5 + $0x1c] sm:$0xf]
      %v768 = vld [vmem:[%s5 + $0x20] sm:$0xf]
      %v769 = vld [vmem:[%s5 + $0x24] sm:$0xf]
      %v770 = vld [vmem:[%s5 + $0x28] sm:$0xf]
      %v771 = vld [vmem:[%s5 + $0x2c] sm:$0xf]
      %v772 = vld [vmem:[%s5 + $0x30] sm:$0xf]
      %v773 = vld [vmem:[%s5 + $0x34] sm:$0xf]
      %v774 = vld [vmem:[%s5 + $0x38] sm:$0xf]
      %v775 = vld [vmem:[%s5 + $0x3c] sm:$0xf]
      %v776 = vld [vmem:[%s6] sm:$0x1]
      %v778 = vlaneseq
      %v779 = vshrl.u32 %v778, 7
      %v780 = vsub.s32 0, %v779
      %v781 = vrot.slane %v776, %v780
      %v799 = vunpack.c.l.b16 %v760
      %v800 = vunpack.c.l.b16 %v761
      %v801 = vunpack.c.l.b16 %v762
      %v802 = vunpack.c.l.b16 %v763
      %v803 = vunpack.c.l.b16 %v764
      %v804 = vunpack.c.l.b16 %v765
      %v805 = vunpack.c.l.b16 %v766
      %v806 = vunpack.c.l.b16 %v767
      %v807 = vunpack.c.l.b16 %v768
      %v808 = vunpack.c.l.b16 %v769
      %v809 = vunpack.c.l.b16 %v770
      %v810 = vunpack.c.l.b16 %v771
      %v811 = vunpack.c.l.b16 %v772
      %v812 = vunpack.c.l.b16 %v773
      %v813 = vunpack.c.l.b16 %v774
      %v814 = vunpack.c.l.b16 %v775
      %v815 = vpack.c.b16 %v800, %v799
      %v816 = vpack.c.b16 %v802, %v801
      %v817 = vpack.c.b16 %v804, %v803
      %v818 = vpack.c.b16 %v806, %v805
      %v819 = vpack.c.b16 %v808, %v807
      %v820 = vpack.c.b16 %v810, %v809
      %v821 = vpack.c.b16 %v812, %v811
      %v822 = vpack.c.b16 %v814, %v813
      %831 = vmatprep.subr.bf16.mxu0 0
      %832 = vmatpush1.bf16.msra.mxu0 %v815
      %833 = vmatprep.subr.bf16.mxu0 0
      %834 = vmatpush1.bf16.msra.mxu0 %v816
      %835 = vmatprep.subr.bf16.mxu0 0
      %836 = vmatpush1.bf16.msra.mxu0 %v817
      %837 = vmatprep.subr.bf16.mxu0 0
      %838 = vmatpush1.bf16.msra.mxu0 %v818
      %839 = vmatprep.subr.bf16.mxu0 0
      %840 = vmatpush1.bf16.msra.mxu0 %v819
      %841 = vmatprep.subr.bf16.mxu0 0
      %842 = vmatpush1.bf16.msra.mxu0 %v820
      %843 = vmatprep.subr.bf16.mxu0 0
      %844 = vmatpush1.bf16.msra.mxu0 %v821
      %845 = vmatprep.subr.bf16.mxu0 0
      %846 = vmatpush1.bf16.msra.mxu0 %v822
      %847 = vmatprep.subr.bf16.mxu0 0
      %848 = vmatpush1.bf16.msra.mxu0 0
      %849 = vmatprep.subr.bf16.mxu0 0
      %850 = vmatpush1.bf16.msra.mxu0 0
      %851 = vmatprep.subr.bf16.mxu0 0
      %852 = vmatpush1.bf16.msra.mxu0 0
      %853 = vmatprep.subr.bf16.mxu0 0
      %854 = vmatpush1.bf16.msra.mxu0 0
      %855 = vmatprep.subr.bf16.mxu0 0
      %856 = vmatpush1.bf16.msra.mxu0 0
      %857 = vmatprep.subr.bf16.mxu0 0
      %858 = vmatpush1.bf16.msra.mxu0 0
      %859 = vmatprep.subr.bf16.mxu0 0
      %860 = vmatpush1.bf16.msra.mxu0 0
      %861 = vmatprep.subr.bf16.mxu0 0
      %862 = vmatpush1.bf16.msra.mxu0 0
      %863 = vmatprep.mubr.bf16.mxu0 0
      %864 = vmatmul.mubr.bf16.gmra.mrb[0].mxu0 %v755
      %v865 = vpop.f32.mrb[0].mxu0
      %v866 = vadd.f32 %v781, %v865
      %v867 = vpop.f32.mrb[0].mxu0
      %v868 = vpop.f32.mrb[0].mxu0
      %v869 = vadd.f32 %v781, %v868
      %v870 = vpop.f32.mrb[0].mxu0
      %871 = vmatprep.mubr.bf16.mxu0 0
      %872 = vmatmul.mubr.bf16.gmra.mrb[0].mxu0 %v756
      %v873 = vpop.f32.mrb[0].mxu0
      %v874 = vadd.f32 %v781, %v873
      %v875 = vpop.f32.mrb[0].mxu0
      %v876 = vpop.f32.mrb[0].mxu0
      %v877 = vadd.f32 %v781, %v876
      %v878 = vpop.f32.mrb[0].mxu0
      %879 = vmatprep.mubr.bf16.mxu0 0
      %880 = vmatmul.mubr.bf16.gmra.mrb[0].mxu0 %v757
      %v881 = vpop.f32.mrb[0].mxu0
      %v882 = vadd.f32 %v781, %v881
      %v883 = vpop.f32.mrb[0].mxu0
      %v884 = vpop.f32.mrb[0].mxu0
      %v885 = vadd.f32 %v781, %v884
      %v886 = vpop.f32.mrb[0].mxu0
      %887 = vmatprep.mubr.bf16.mxu0 0
      %888 = vmatmul.mubr.bf16.gmra.mrb[0].mxu0 %v758
      %v889 = vpop.f32.mrb[0].mxu0
      %v890 = vadd.f32 %v781, %v889
      %v891 = vpop.f32.mrb[0].mxu0
      %v892 = vpop.f32.mrb[0].mxu0
      %v893 = vadd.f32 %v781, %v892
      %v894 = vpop.f32.mrb[0].mxu0
      %895 = vmatprep.mubr.bf16.mxu0 0
      %896 = vmatmul.mubr.bf16.gmra.mrb[0].mxu0 %v759
      %v897 = vpop.f32.mrb[0].mxu0
      %v898 = vadd.f32 %v781, %v897
      %v899 = vpop.f32.mrb[0].mxu0
      %v900 = vpop.f32.mrb[0].mxu0
      %v901 = vadd.f32 %v781, %v900
      %v902 = vpop.f32.mrb[0].mxu0
      %903 = vdwg.mxu0
      %904 = vadd.xlane.f32.xlu0 %v866
      %v905 = vpop.xlane.xlu0 %904
      %906 = vadd.xlane.f32.xlu0 %v869
      %v907 = vpop.xlane.xlu0 %906
      %908 = vadd.xlane.f32.xlu0 %v874
      %v909 = vpop.xlane.xlu0 %908
      %910 = vadd.xlane.f32.xlu0 %v877
      %v911 = vpop.xlane.xlu0 %910
      %912 = vadd.xlane.f32.xlu0 %v882
      %v913 = vpop.xlane.xlu0 %912
      %914 = vadd.xlane.f32.xlu0 %v885
      %v915 = vpop.xlane.xlu0 %914
      %916 = vadd.xlane.f32.xlu0 %v890
      %v917 = vpop.xlane.xlu0 %916
      %918 = vadd.xlane.f32.xlu0 %v893
      %v919 = vpop.xlane.xlu0 %918
      %920 = vadd.xlane.f32.xlu0 %v898
      %v921 = vpop.xlane.xlu0 %920
      %922 = vadd.xlane.f32.xlu0 %v901
      %v923 = vpop.xlane.xlu0 %922
      %v924 = vmul.f32 %v905, %v620
      %v925 = vmul.f32 %v907, %v620
      %v926 = vmul.f32 %v909, %v620
      %v927 = vmul.f32 %v911, %v620
      %v928 = vmul.f32 %v913, %v620
      %v929 = vmul.f32 %v915, %v620
      %v930 = vmul.f32 %v917, %v620
      %v931 = vmul.f32 %v919, %v620
      %v932 = vmul.f32 %v921, %v620
      %v933 = vmul.f32 %v923, %v620
      %v934 = vsub.f32 %v866, %v924
      %v935 = vsub.f32 %v869, %v925
      %v936 = vsub.f32 %v874, %v926
      %v937 = vsub.f32 %v877, %v927
      %v938 = vsub.f32 %v882, %v928
      %v939 = vsub.f32 %v885, %v929
      %v940 = vsub.f32 %v890, %v930
      %v941 = vsub.f32 %v893, %v931
      %v942 = vsub.f32 %v898, %v932
      %v943 = vsub.f32 %v901, %v933
      %v944 = vmul.f32 %v934, %v934
      %v945 = vmul.f32 %v935, %v935
      %v946 = vmul.f32 %v936, %v936
      %v947 = vmul.f32 %v937, %v937
      %v948 = vmul.f32 %v938, %v938
      %v949 = vmul.f32 %v939, %v939
      %v950 = vmul.f32 %v940, %v940
      %v951 = vmul.f32 %v941, %v941
      %v952 = vmul.f32 %v942, %v942
      %v953 = vmul.f32 %v943, %v943
      %954 = vadd.xlane.f32.xlu0 %v944
      %v955 = vpop.xlane.xlu0 %954
      %956 = vadd.xlane.f32.xlu0 %v945
      %v957 = vpop.xlane.xlu0 %956
      %958 = vadd.xlane.f32.xlu0 %v946
      %v959 = vpop.xlane.xlu0 %958
      %960 = vadd.xlane.f32.xlu0 %v947
      %v961 = vpop.xlane.xlu0 %960
      %962 = vadd.xlane.f32.xlu0 %v948
      %v963 = vpop.xlane.xlu0 %962
      %964 = vadd.xlane.f32.xlu0 %v949
      %v965 = vpop.xlane.xlu0 %964
      %966 = vadd.xlane.f32.xlu0 %v950
      %v967 = vpop.xlane.xlu0 %966
      %968 = vadd.xlane.f32.xlu0 %v951
      %v969 = vpop.xlane.xlu0 %968
      %970 = vadd.xlane.f32.xlu0 %v952
      %v971 = vpop.xlane.xlu0 %970
      %972 = vadd.xlane.f32.xlu0 %v953
      %v973 = vpop.xlane.xlu0 %972
      %v974 = vmul.f32 %v955, %v620
      %v975 = vmul.f32 %v957, %v620
      %v976 = vmul.f32 %v959, %v620
      %v977 = vmul.f32 %v961, %v620
      %v978 = vmul.f32 %v963, %v620
      %v979 = vmul.f32 %v965, %v620
      %v980 = vmul.f32 %v967, %v620
      %v981 = vmul.f32 %v969, %v620
      %v982 = vmul.f32 %v971, %v620
      %v983 = vmul.f32 %v973, %v620
      %v984 = vld [vmem:[%s7] sm:$0x1]
      %v985 = vadd.f32 %v974, 1e-05
      %v986 = vadd.f32 %v975, 1e-05
      %v987 = vadd.f32 %v976, 1e-05
      %v988 = vadd.f32 %v977, 1e-05
      %v989 = vadd.f32 %v978, 1e-05
      %v990 = vadd.f32 %v979, 1e-05
      %v991 = vadd.f32 %v980, 1e-05
      %v992 = vadd.f32 %v981, 1e-05
      %v993 = vadd.f32 %v982, 1e-05
      %v994 = vadd.f32 %v983, 1e-05
      %v995 = vrsqrt.pop %v985
      %v996 = vrsqrt.pop %v986
      %v997 = vrsqrt.pop %v987
      %v998 = vrsqrt.pop %v988
      %v999 = vrsqrt.pop %v989
      %v1000 = vrsqrt.pop %v990
      %v1001 = vrsqrt.pop %v991
      %v1002 = vrsqrt.pop %v992
      %v1003 = vrsqrt.pop %v993
      %v1004 = vrsqrt.pop %v994
      %v1006 = vlaneseq
      %v1007 = vshrl.u32 %v1006, 7
      %v1008 = vsub.s32 0, %v1007
      %v1009 = vrot.slane %v984, %v1008
      %v1011 = vmul.f32 %v1009, %v995
      %v1012 = vmul.f32 %v1009, %v996
      %v1013 = vmul.f32 %v1009, %v997
      %v1014 = vmul.f32 %v1009, %v998
      %v1015 = vmul.f32 %v1009, %v999
      %v1016 = vmul.f32 %v1009, %v1000
      %v1017 = vmul.f32 %v1009, %v1001
      %v1018 = vmul.f32 %v1009, %v1002
      %v1019 = vmul.f32 %v1009, %v1003
      %v1020 = vmul.f32 %v1009, %v1004
      %v1021 = vmul.f32 %v934, %v1011
      %v1022 = vmul.f32 %v935, %v1012
      %v1023 = vmul.f32 %v936, %v1013
      %v1024 = vmul.f32 %v937, %v1014
      %v1025 = vmul.f32 %v938, %v1015
      %v1026 = vmul.f32 %v939, %v1016
      %v1027 = vmul.f32 %v940, %v1017
      %v1028 = vmul.f32 %v941, %v1018
      %v1029 = vmul.f32 %v942, %v1019
      %v1030 = vmul.f32 %v943, %v1020
      %v1031 = vld [vmem:[%s8] sm:$0x1]
      %v1033 = vlaneseq
      %v1034 = vshrl.u32 %v1033, 7
      %v1035 = vsub.s32 0, %v1034
      %v1036 = vrot.slane %v1031, %v1035
      %v1038 = vadd.f32 %v1021, %v1036
      %v1039 = vadd.f32 %v1022, %v1036
      %v1040 = vadd.f32 %v1023, %v1036
      %v1041 = vadd.f32 %v1024, %v1036
      %v1042 = vadd.f32 %v1025, %v1036
      %v1043 = vadd.f32 %v1026, %v1036
      %v1044 = vadd.f32 %v1027, %v1036
      %v1045 = vadd.f32 %v1028, %v1036
      %v1046 = vadd.f32 %v1029, %v1036
      %v1047 = vadd.f32 %v1030, %v1036
      %v1048 = vmax.f32 %v1038, 0.0
      %v1049 = vmax.f32 %v1039, 0.0
      %v1050 = vmax.f32 %v1040, 0.0
      %v1051 = vmax.f32 %v1041, 0.0
      %v1052 = vmax.f32 %v1042, 0.0
      %v1053 = vmax.f32 %v1043, 0.0
      %v1054 = vmax.f32 %v1044, 0.0
      %v1055 = vmax.f32 %v1045, 0.0
      %v1056 = vmax.f32 %v1046, 0.0
      %v1057 = vmax.f32 %v1047, 0.0
      %v1058 = vpack.c.bf16 %v1049, %v1048
      %v1059 = vpack.c.bf16 %v1051, %v1050
      %v1060 = vpack.c.bf16 %v1053, %v1052
      %v1061 = vpack.c.bf16 %v1055, %v1054
      %v1062 = vpack.c.bf16 %v1057, %v1056
      %v1063 = vld [vmem:[%s9] sm:$0xf]
      %v1064 = vld [vmem:[%s9 + $0x4] sm:$0xf]
      %v1065 = vld [vmem:[%s9 + $0x8] sm:$0xf]
      %v1066 = vld [vmem:[%s9 + $0xc] sm:$0xf]
      %v1067 = vld [vmem:[%s9 + $0x10] sm:$0xf]
      %v1068 = vld [vmem:[%s9 + $0x14] sm:$0xf]
      %v1069 = vld [vmem:[%s9 + $0x18] sm:$0xf]
      %v1070 = vld [vmem:[%s9 + $0x1c] sm:$0xf]
      %v1071 = vld [vmem:[%s9 + $0x20] sm:$0xf]
      %v1072 = vld [vmem:[%s9 + $0x24] sm:$0xf]
      %v1073 = vld [vmem:[%s9 + $0x28] sm:$0xf]
      %v1074 = vld [vmem:[%s9 + $0x2c] sm:$0xf]
      %v1075 = vld [vmem:[%s9 + $0x30] sm:$0xf]
      %v1076 = vld [vmem:[%s9 + $0x34] sm:$0xf]
      %v1077 = vld [vmem:[%s9 + $0x38] sm:$0xf]
      %v1078 = vld [vmem:[%s9 + $0x3c] sm:$0xf]
      %v1079 = vld [vmem:[%s10] sm:$0x1]
      %v1081 = vlaneseq
      %v1082 = vshrl.u32 %v1081, 7
      %v1083 = vsub.s32 0, %v1082
      %v1084 = vrot.slane %v1079, %v1083
      %v1102 = vunpack.c.l.b16 %v1063
      %v1103 = vunpack.c.l.b16 %v1064
      %v1104 = vunpack.c.l.b16 %v1065
      %v1105 = vunpack.c.l.b16 %v1066
      %v1106 = vunpack.c.l.b16 %v1067
      %v1107 = vunpack.c.l.b16 %v1068
      %v1108 = vunpack.c.l.b16 %v1069
      %v1109 = vunpack.c.l.b16 %v1070
      %v1110 = vunpack.c.l.b16 %v1071
      %v1111 = vunpack.c.l.b16 %v1072
      %v1112 = vunpack.c.l.b16 %v1073
      %v1113 = vunpack.c.l.b16 %v1074
      %v1114 = vunpack.c.l.b16 %v1075
      %v1115 = vunpack.c.l.b16 %v1076
      %v1116 = vunpack.c.l.b16 %v1077
      %v1117 = vunpack.c.l.b16 %v1078
      %v1118 = vpack.c.b16 %v1103, %v1102
      %v1119 = vpack.c.b16 %v1105, %v1104
      %v1120 = vpack.c.b16 %v1107, %v1106
      %v1121 = vpack.c.b16 %v1109, %v1108
      %v1122 = vpack.c.b16 %v1111, %v1110
      %v1123 = vpack.c.b16 %v1113, %v1112
      %v1124 = vpack.c.b16 %v1115, %v1114
      %v1125 = vpack.c.b16 %v1117, %v1116
      %1134 = vmatprep.subr.bf16.mxu0 0
      %1135 = vmatpush1.bf16.msra.mxu0 %v1118
      %1136 = vmatprep.subr.bf16.mxu0 0
      %1137 = vmatpush1.bf16.msra.mxu0 %v1119
      %1138 = vmatprep.subr.bf16.mxu0 0
      %1139 = vmatpush1.bf16.msra.mxu0 %v1120
      %1140 = vmatprep.subr.bf16.mxu0 0
      %1141 = vmatpush1.bf16.msra.mxu0 %v1121
      %1142 = vmatprep.subr.bf16.mxu0 0
      %1143 = vmatpush1.bf16.msra.mxu0 %v1122
      %1144 = vmatprep.subr.bf16.mxu0 0
      %1145 = vmatpush1.bf16.msra.mxu0 %v1123
      %1146 = vmatprep.subr.bf16.mxu0 0
      %1147 = vmatpush1.bf16.msra.mxu0 %v1124
      %1148 = vmatprep.subr.bf16.mxu0 0
      %1149 = vmatpush1.bf16.msra.mxu0 %v1125
      %1150 = vmatprep.subr.bf16.mxu0 0
      %1151 = vmatpush1.bf16.msra.mxu0 0
      %1152 = vmatprep.subr.bf16.mxu0 0
      %1153 = vmatpush1.bf16.msra.mxu0 0
      %1154 = vmatprep.subr.bf16.mxu0 0
      %1155 = vmatpush1.bf16.msra.mxu0 0
      %1156 = vmatprep.subr.bf16.mxu0 0
      %1157 = vmatpush1.bf16.msra.mxu0 0
      %1158 = vmatprep.subr.bf16.mxu0 0
      %1159 = vmatpush1.bf16.msra.mxu0 0
      %1160 = vmatprep.subr.bf16.mxu0 0
      %1161 = vmatpush1.bf16.msra.mxu0 0
      %1162 = vmatprep.subr.bf16.mxu0 0
      %1163 = vmatpush1.bf16.msra.mxu0 0
      %1164 = vmatprep.subr.bf16.mxu0 0
      %1165 = vmatpush1.bf16.msra.mxu0 0
      %1166 = vmatprep.mubr.bf16.mxu0 0
      %1167 = vmatmul.mubr.bf16.gmra.mrb[0].mxu0 %v1058
      %v1168 = vpop.f32.mrb[0].mxu0
      %v1169 = vadd.f32 %v1084, %v1168
      %v1170 = vpop.f32.mrb[0].mxu0
      %v1171 = vpop.f32.mrb[0].mxu0
      %v1172 = vadd.f32 %v1084, %v1171
      %v1173 = vpop.f32.mrb[0].mxu0
      %1174 = vmatprep.mubr.bf16.mxu0 0
      %1175 = vmatmul.mubr.bf16.gmra.mrb[0].mxu0 %v1059
      %v1176 = vpop.f32.mrb[0].mxu0
      %v1177 = vadd.f32 %v1084, %v1176
      %v1178 = vpop.f32.mrb[0].mxu0
      %v1179 = vpop.f32.mrb[0].mxu0
      %v1180 = vadd.f32 %v1084, %v1179
      %v1181 = vpop.f32.mrb[0].mxu0
      %1182 = vmatprep.mubr.bf16.mxu0 0
      %1183 = vmatmul.mubr.bf16.gmra.mrb[0].mxu0 %v1060
      %v1184 = vpop.f32.mrb[0].mxu0
      %v1185 = vadd.f32 %v1084, %v1184
      %v1186 = vpop.f32.mrb[0].mxu0
      %v1187 = vpop.f32.mrb[0].mxu0
      %v1188 = vadd.f32 %v1084, %v1187
      %v1189 = vpop.f32.mrb[0].mxu0
      %1190 = vmatprep.mubr.bf16.mxu0 0
      %1191 = vmatmul.mubr.bf16.gmra.mrb[0].mxu0 %v1061
      %v1192 = vpop.f32.mrb[0].mxu0
      %v1193 = vadd.f32 %v1084, %v1192
      %v1194 = vpop.f32.mrb[0].mxu0
      %v1195 = vpop.f32.mrb[0].mxu0
      %v1196 = vadd.f32 %v1084, %v1195
      %v1197 = vpop.f32.mrb[0].mxu0
      %1198 = vmatprep.mubr.bf16.mxu0 0
      %1199 = vmatmul.mubr.bf16.gmra.mrb[0].mxu0 %v1062
      %v1200 = vpop.f32.mrb[0].mxu0
      %v1201 = vadd.f32 %v1084, %v1200
      %v1202 = vpop.f32.mrb[0].mxu0
      %v1203 = vpop.f32.mrb[0].mxu0
      %v1204 = vadd.f32 %v1084, %v1203
      %v1205 = vpop.f32.mrb[0].mxu0
      %1206 = vdwg.mxu0
      %vm1207 = vcmask 523264
      %v1208 = vsel %vm1207, %v1169, 0.0
      %1209 = vadd.xlane.f32.xlu0 %v1208
      %v1210 = vpop.xlane.xlu0 %1209
      %v1211 = vsel %vm1207, %v1172, 0.0
      %1212 = vadd.xlane.f32.xlu0 %v1211
      %v1213 = vpop.xlane.xlu0 %1212
      %v1214 = vsel %vm1207, %v1177, 0.0
      %1215 = vadd.xlane.f32.xlu0 %v1214
      %v1216 = vpop.xlane.xlu0 %1215
      %v1217 = vsel %vm1207, %v1180, 0.0
      %1218 = vadd.xlane.f32.xlu0 %v1217
      %v1219 = vpop.xlane.xlu0 %1218
      %v1220 = vsel %vm1207, %v1185, 0.0
      %1221 = vadd.xlane.f32.xlu0 %v1220
      %v1222 = vpop.xlane.xlu0 %1221
      %v1223 = vsel %vm1207, %v1188, 0.0
      %1224 = vadd.xlane.f32.xlu0 %v1223
      %v1225 = vpop.xlane.xlu0 %1224
      %v1226 = vsel %vm1207, %v1193, 0.0
      %1227 = vadd.xlane.f32.xlu0 %v1226
      %v1228 = vpop.xlane.xlu0 %1227
      %v1229 = vsel %vm1207, %v1196, 0.0
      %1230 = vadd.xlane.f32.xlu0 %v1229
      %v1231 = vpop.xlane.xlu0 %1230
      %v1232 = vsel %vm1207, %v1201, 0.0
      %1233 = vadd.xlane.f32.xlu0 %v1232
      %v1234 = vpop.xlane.xlu0 %1233
      %v1235 = vsel %vm1207, %v1204, 0.0
      %1236 = vadd.xlane.f32.xlu0 %v1235
      %v1237 = vpop.xlane.xlu0 %1236
      %v1238 = vrcp.pop 64.0
      %v1239 = vmul.f32 %v1210, %v1238
      %v1240 = vmul.f32 %v1213, %v1238
      %v1241 = vmul.f32 %v1216, %v1238
      %v1242 = vmul.f32 %v1219, %v1238
      %v1243 = vmul.f32 %v1222, %v1238
      %v1244 = vmul.f32 %v1225, %v1238
      %v1245 = vmul.f32 %v1228, %v1238
      %v1246 = vmul.f32 %v1231, %v1238
      %v1247 = vmul.f32 %v1234, %v1238
      %v1248 = vmul.f32 %v1237, %v1238
      %v1249 = vsub.f32 %v1169, %v1239
      %v1250 = vsub.f32 %v1172, %v1240
      %v1251 = vsub.f32 %v1177, %v1241
      %v1252 = vsub.f32 %v1180, %v1242
      %v1253 = vsub.f32 %v1185, %v1243
      %v1254 = vsub.f32 %v1188, %v1244
      %v1255 = vsub.f32 %v1193, %v1245
      %v1256 = vsub.f32 %v1196, %v1246
      %v1257 = vsub.f32 %v1201, %v1247
      %v1258 = vsub.f32 %v1204, %v1248
      %v1259 = vmul.f32 %v1249, %v1249
      %v1260 = vmul.f32 %v1250, %v1250
      %v1261 = vmul.f32 %v1251, %v1251
      %v1262 = vmul.f32 %v1252, %v1252
      %v1263 = vmul.f32 %v1253, %v1253
      %v1264 = vmul.f32 %v1254, %v1254
      %v1265 = vmul.f32 %v1255, %v1255
      %v1266 = vmul.f32 %v1256, %v1256
      %v1267 = vmul.f32 %v1257, %v1257
      %v1268 = vmul.f32 %v1258, %v1258
      %v1269 = vsel %vm1207, %v1259, 0.0
      %1270 = vadd.xlane.f32.xlu0 %v1269
      %v1271 = vpop.xlane.xlu0 %1270
      %v1272 = vsel %vm1207, %v1260, 0.0
      %1273 = vadd.xlane.f32.xlu0 %v1272
      %v1274 = vpop.xlane.xlu0 %1273
      %v1275 = vsel %vm1207, %v1261, 0.0
      %1276 = vadd.xlane.f32.xlu0 %v1275
      %v1277 = vpop.xlane.xlu0 %1276
      %v1278 = vsel %vm1207, %v1262, 0.0
      %1279 = vadd.xlane.f32.xlu0 %v1278
      %v1280 = vpop.xlane.xlu0 %1279
      %v1281 = vsel %vm1207, %v1263, 0.0
      %1282 = vadd.xlane.f32.xlu0 %v1281
      %v1283 = vpop.xlane.xlu0 %1282
      %v1284 = vsel %vm1207, %v1264, 0.0
      %1285 = vadd.xlane.f32.xlu0 %v1284
      %v1286 = vpop.xlane.xlu0 %1285
      %v1287 = vsel %vm1207, %v1265, 0.0
      %1288 = vadd.xlane.f32.xlu0 %v1287
      %v1289 = vpop.xlane.xlu0 %1288
      %v1290 = vsel %vm1207, %v1266, 0.0
      %1291 = vadd.xlane.f32.xlu0 %v1290
      %v1292 = vpop.xlane.xlu0 %1291
      %v1293 = vsel %vm1207, %v1267, 0.0
      %1294 = vadd.xlane.f32.xlu0 %v1293
      %v1295 = vpop.xlane.xlu0 %1294
      %v1296 = vsel %vm1207, %v1268, 0.0
      %1297 = vadd.xlane.f32.xlu0 %v1296
      %v1298 = vpop.xlane.xlu0 %1297
      %v1299 = vmul.f32 %v1271, %v1238
      %v1300 = vmul.f32 %v1274, %v1238
      %v1301 = vmul.f32 %v1277, %v1238
      %v1302 = vmul.f32 %v1280, %v1238
      %v1303 = vmul.f32 %v1283, %v1238
      %v1304 = vmul.f32 %v1286, %v1238
      %v1305 = vmul.f32 %v1289, %v1238
      %v1306 = vmul.f32 %v1292, %v1238
      %v1307 = vmul.f32 %v1295, %v1238
      %v1308 = vmul.f32 %v1298, %v1238
      %v1309 = vld [vmem:[%s11] sm:$0x1]
      %v1310 = vadd.f32 %v1299, 1e-05
      %v1311 = vadd.f32 %v1300, 1e-05
      %v1312 = vadd.f32 %v1301, 1e-05
      %v1313 = vadd.f32 %v1302, 1e-05
      %v1314 = vadd.f32 %v1303, 1e-05
      %v1315 = vadd.f32 %v1304, 1e-05
      %v1316 = vadd.f32 %v1305, 1e-05
      %v1317 = vadd.f32 %v1306, 1e-05
      %v1318 = vadd.f32 %v1307, 1e-05
      %v1319 = vadd.f32 %v1308, 1e-05
      %v1320 = vrsqrt.pop %v1310
      %v1321 = vrsqrt.pop %v1311
      %v1322 = vrsqrt.pop %v1312
      %v1323 = vrsqrt.pop %v1313
      %v1324 = vrsqrt.pop %v1314
      %v1325 = vrsqrt.pop %v1315
      %v1326 = vrsqrt.pop %v1316
      %v1327 = vrsqrt.pop %v1317
      %v1328 = vrsqrt.pop %v1318
      %v1329 = vrsqrt.pop %v1319
      %v1331 = vlaneseq
      %v1332 = vshrl.u32 %v1331, 7
      %v1333 = vsub.s32 0, %v1332
      %v1334 = vrot.slane %v1309, %v1333
      %v1336 = vmul.f32 %v1334, %v1320
      %v1337 = vmul.f32 %v1334, %v1321
      %v1338 = vmul.f32 %v1334, %v1322
      %v1339 = vmul.f32 %v1334, %v1323
      %v1340 = vmul.f32 %v1334, %v1324
      %v1341 = vmul.f32 %v1334, %v1325
      %v1342 = vmul.f32 %v1334, %v1326
      %v1343 = vmul.f32 %v1334, %v1327
      %v1344 = vmul.f32 %v1334, %v1328
      %v1345 = vmul.f32 %v1334, %v1329
      %v1346 = vmul.f32 %v1249, %v1336
      %v1347 = vmul.f32 %v1250, %v1337
      %v1348 = vmul.f32 %v1251, %v1338
      %v1349 = vmul.f32 %v1252, %v1339
      %v1350 = vmul.f32 %v1253, %v1340
      %v1351 = vmul.f32 %v1254, %v1341
      %v1352 = vmul.f32 %v1255, %v1342
      %v1353 = vmul.f32 %v1256, %v1343
      %v1354 = vmul.f32 %v1257, %v1344
      %v1355 = vmul.f32 %v1258, %v1345
      %v1356 = vld [vmem:[%s12] sm:$0x1]
      %v1358 = vlaneseq
      %v1359 = vshrl.u32 %v1358, 7
      %v1360 = vsub.s32 0, %v1359
      %v1361 = vrot.slane %v1356, %v1360
      %v1363 = vadd.f32 %v1346, %v1361
      %v1364 = vadd.f32 %v1347, %v1361
      %v1365 = vadd.f32 %v1348, %v1361
      %v1366 = vadd.f32 %v1349, %v1361
      %v1367 = vadd.f32 %v1350, %v1361
      %v1368 = vadd.f32 %v1351, %v1361
      %v1369 = vadd.f32 %v1352, %v1361
      %v1370 = vadd.f32 %v1353, %v1361
      %v1371 = vadd.f32 %v1354, %v1361
      %v1372 = vadd.f32 %v1355, %v1361
      %v1373 = vmax.f32 %v1363, 0.0
      %v1374 = vmax.f32 %v1364, 0.0
      %v1375 = vmax.f32 %v1365, 0.0
      %v1376 = vmax.f32 %v1366, 0.0
      %v1377 = vmax.f32 %v1367, 0.0
      %v1378 = vmax.f32 %v1368, 0.0
      %v1379 = vmax.f32 %v1369, 0.0
      %v1380 = vmax.f32 %v1370, 0.0
      %v1381 = vmax.f32 %v1371, 0.0
      %v1382 = vmax.f32 %v1372, 0.0
      %1383 = vst.msk [vmem:[%s442] sm:$0xff] %vm1207, %v1373
      %1384 = vst.msk [vmem:[%s442 + $0x8] sm:$0xff] %vm1207, %v1374
      %1385 = vst.msk [vmem:[%s442 + $0x10] sm:$0xff] %vm1207, %v1375
      %1386 = vst.msk [vmem:[%s442 + $0x18] sm:$0xff] %vm1207, %v1376
      %1387 = vst.msk [vmem:[%s442 + $0x20] sm:$0xff] %vm1207, %v1377
      %1388 = vst.msk [vmem:[%s442 + $0x28] sm:$0xff] %vm1207, %v1378
      %1389 = vst.msk [vmem:[%s442 + $0x30] sm:$0xff] %vm1207, %v1379
      %1390 = vst.msk [vmem:[%s442 + $0x38] sm:$0xff] %vm1207, %v1380
      %1391 = vst.msk [vmem:[%s442 + $0x40] sm:$0xff] %vm1207, %v1381
      %1392 = vst.msk [vmem:[%s442 + $0x48] sm:$0xff] %vm1207, %v1382
      %s1393 = smul.u32 10, %s24
      %p1394 = scmp.lt.s32.totalorder %s1393, 39
      %s1395 = scalar_select %p1394, %s1393, 39
      %s1396 = smul.addr %s1395, 8
      %s1397 = scalar_lea.vmem %s13, %s1396
      // Predicated region
      $region73: #{_forward_impl.1} parent=71 // pred_check
        %p1398 = pneg %p320
      $region74: #{_forward_impl.1} parent=71 // pred_check_branch
        %1400 = sbr.rel (%p1398) target = $region76
      $region75: #{_forward_impl.1} parent=71 // pred_region
        %s1401 = smul.u32 10, %s24
      $region76: #{_forward_impl.1} parent=71 // pred_fallthru
        _
    $region72: #{_forward_impl.1} parent=5 // pred_fallthru
      _
    %p1402 = scmp.le.s32.totalorder 2, %s19
    // Predicated region
    $region77: #{_forward_impl.1} parent=5 // pred_check
      %p1403 = pneg %p1402
    $region78: #{_forward_impl.1} parent=5 // pred_check_branch
      %1405 = sbr.rel (%p1403) target = $region80
    $region79: #{_forward_impl.1} parent=5 // pred_region
      %s1406 = ssub.s32 %s19, 2
      // Predicated region
      $region81: #{_forward_impl.1} parent=79 // pred_check
        %p1407 = pneg %p326
      $region82: #{_forward_impl.1} parent=79 // pred_check_branch
        %1409 = sbr.rel (%p1407) target = $region84
      $region83: #{_forward_impl.1} parent=79 // pred_region
        %s1410 = smul.u32 10, %s25
        %p1411 = scmp.lt.s32.totalorder %s1410, 39
        %s1412 = scalar_select %p1411, %s1410, 39
        %s1413 = smul.addr %s1412, 8
        %s1414 = scalar_lea.vmem %s13, %s1413
      $region84: #{_forward_impl.1} parent=79 // pred_fallthru
        _
    $region80: #{_forward_impl.1} parent=5 // pred_fallthru
      _
  $region6: #{_forward_impl.1} parent=0 // loop_footer
    %s23 = sadd.s32 1, %s19
  $region7: #{_forward_impl.1} parent=0 // loop_footer_branch
    %18 = sbr.rel target = $region3
  $region8: #{_forward_impl.1} parent=0 // loop_exit
    _

</llo_original>
